<compile_context>
chip_gen: v5e
topology: v5e:2x2
jax: 0.10.0
libtpu: 0.0.40
codegen_flags: <defaults>
</compile_context>

<pallas_src>
import functools

import jax
import jax.numpy as jnp
import numpy as np
from jax import lax
from jax.experimental import pallas as pl
from jax.experimental.pallas import tpu as pltpu

_CHUNK = 128           # lane-chunk width for both the i and j bid axes
_SUB_P = 8             # projects per sub-tile (one f32 sublane group)
_BIG = 1.0e30          # sentinel stored in padded bid slots
_BIG_THRESH = 1.0e29   # anything >= this is padding
_NEG = -1.0e30         # neutral element for the masked max-select
_NACC = 8              # partial rank accumulators (break the VALU add chain)


# --------------------------------------------------------------------------- #
# Phase 1: per-project vote count + exact inner_loop median.
# --------------------------------------------------------------------------- #
def _median_count_kernel(amounts_ref, med_ref, cnt_ref):
    block_p, n = amounts_ref.shape
    n_chunks = n // _CHUNK
    n_sub = block_p // _SUB_P

    @pl.loop(0, n_sub)                       # 8-project sub-tiles of this block
    def _sub_tile(s):
        row0 = pl.multiple_of(s * _SUB_P, _SUB_P)

        # ---- per-project count of real (non-sentinel) bids ------------------
        def count_body(c, cnt):
            start = pl.multiple_of(c * _CHUNK, _CHUNK)
            xc = amounts_ref[pl.ds(row0, _SUB_P), pl.ds(start, _CHUNK)]
            return cnt + jnp.sum((xc < _BIG_THRESH).astype(jnp.float32),
                                 axis=1, keepdims=True)

        counts = lax.fori_loop(0, n_chunks, count_body,
                               jnp.zeros((_SUB_P, 1), jnp.float32))
        # (n-1)//2 and n//2 as exact f32 integers (counts << 2^24).
        idx_lo = jnp.floor((counts - 1.0) * 0.5)
        idx_hi = jnp.floor(counts * 0.5)

        # ---- exact order-statistic median via lane-roll rank counting -------
        def i_body(ic, carry):
            sel_lo, sel_hi = carry
            i_start = pl.multiple_of(ic * _CHUNK, _CHUNK)
            xi = amounts_ref[pl.ds(row0, _SUB_P), pl.ds(i_start, _CHUNK)]

            def j_body(jc, rank):
                j_start = pl.multiple_of(jc * _CHUNK, _CHUNK)
                xj = amounts_ref[pl.ds(row0, _SUB_P), pl.ds(j_start, _CHUNK)]
                # rank[p, i] += #{ j in this chunk : x[p, j] < x[p, i] }.
                # 128 static lane rotations; XLU roll + VPU cmp/add per shift,
                # 8 partial accumulators to keep the add chain short.
                acc = [jnp.zeros((_SUB_P, _CHUNK), jnp.float32)
                       for _ in range(_NACC)]
                for sft in range(_CHUNK):
                    xs = xj if sft == 0 else pltpu.roll(xj, shift=sft, axis=1)
                    acc[sft % _NACC] = (acc[sft % _NACC]
                                        + (xs < xi).astype(jnp.float32))
                total = acc[0]
                for a in acc[1:]:
                    total = total + a
                return rank + total

            rank = lax.fori_loop(0, n_chunks, j_body,
                                 jnp.zeros((_SUB_P, _CHUNK), jnp.float32))

            # k-th smallest = max over real i of { x_i : rank_lt(x_i) <= k }.
            # Sentinel entries have rank == counts > k, so they self-exclude;
            # valid_i kept as a cheap belt-and-braces guard.
            valid_i = xi < _BIG_THRESH
            cand_lo = jnp.where(jnp.logical_and(valid_i, rank <= idx_lo), xi, _NEG)
            cand_hi = jnp.where(jnp.logical_and(valid_i, rank <= idx_hi), xi, _NEG)
            sel_lo = jnp.maximum(sel_lo, jnp.max(cand_lo, axis=1, keepdims=True))
            sel_hi = jnp.maximum(sel_hi, jnp.max(cand_hi, axis=1, keepdims=True))
            return sel_lo, sel_hi

        neg = jnp.full((_SUB_P, 1), _NEG, jnp.float32)
        sel_lo, sel_hi = lax.fori_loop(0, n_chunks, i_body, (neg, neg))

        median = 0.5 * (sel_lo + sel_hi)
        median = jnp.where(counts > 0.0, median, 0.0)   # padded project rows

        # Full (8, 128) vreg, unmasked, lane-dense stores.
        med_ref[pl.ds(row0, _SUB_P), :] = jnp.broadcast_to(median,
                                                           (_SUB_P, _CHUNK))
        cnt_ref[pl.ds(row0, _SUB_P), :] = jnp.broadcast_to(counts,
                                                           (_SUB_P, _CHUNK))


# --------------------------------------------------------------------------- #
# Phase 2: iterative eligibility / scaling loop (consumes Phase-1 tiles as-is).
# --------------------------------------------------------------------------- #
def _scale_kernel(med_ref, cnt_ref, out_ref, *, quorum, total_amount,
                  min_amount, num_iterations):
    med = med_ref[...]                         # (P_pad, 128), lanes identical
    cnt = cnt_ref[...]
    elig_med = med * (cnt >= quorum).astype(jnp.float32)

    mask = jnp.ones_like(med)                  # first forward() iteration: mask=None
    scaled = jnp.zeros_like(med)
    for _ in range(num_iterations):            # tiny static unroll
        masked = elig_med * mask
        # Sum over projects (sublanes); lanes are identical copies so every
        # lane of `amount` holds the correct total.
        amount = jnp.sum(masked, axis=0, keepdims=True)          # (1, 128)
        # Divide-free threshold test:  ratio >= min_ratio  <=>
        #   masked * total_amount >= min_amount * amount   (amount >= 0).
        meets = (masked * total_amount >= min_amount * amount).astype(jnp.float32)
        # Reference NaNs when nothing is eligible; we return all-zeros instead.
        denom = jnp.where(amount > 0.0, amount, 1.0)
        ratio = masked / denom
        scaled = total_amount * ratio * meets
        mask = meets
    out_ref[...] = scaled                      # lane-dense (P_pad, 128) store


# --------------------------------------------------------------------------- #
# Wrapper.
# --------------------------------------------------------------------------- #
def _choose_block_p(p_pad, n_pad):
    """Projects per grid step: big blocks, but >=2 grid steps (v7x megacore)
    and a double-buffered input block that stays well inside every
    generation's scoped VMEM."""
    n_sub = p_pad // _SUB_P
    if n_sub <= 1:
        return _SUB_P
    max_sub_mem = max(1, (12 << 20) // (2 * 4 * n_pad * _SUB_P))
    block_sub = max(1, min(8, n_sub // 2, max_sub_mem))
    while n_sub % block_sub:
        block_sub -= 1
    return block_sub * _SUB_P


def project_allocator_forward(vote_lists, *, total_amount, min_amount, quorum,
                              num_iterations=1):
    """vote_lists: list of 1-D arrays of per-project vote amounts."""
    total_amount = int(total_amount)
    min_amount = int(min_amount)

    P = len(vote_lists)
    max_bids = max(len(v) for v in vote_lists)
    N_pad = max(_CHUNK, -(-max_bids // _CHUNK) * _CHUNK)
    P_pad = max(_SUB_P, -(-P // _SUB_P) * _SUB_P)
    BLOCK_P = _choose_block_p(P_pad, N_pad)
    grid = (P_pad // BLOCK_P,)

    # Sentinel padding (review: no separate `valid` array -> half the DMA).
    amounts = np.full((P_pad, N_pad), _BIG, dtype=np.float32)
    for p, v in enumerate(vote_lists):
        v = np.asarray(v, dtype=np.float32)
        if v.size:
            assert float(np.max(np.abs(v))) < _BIG_THRESH, (
                "vote amounts must stay below the padding sentinel")
            amounts[p, :v.size] = v
    amounts = jnp.asarray(amounts)

    # VMEM budget: double-buffered (BLOCK_P, N_pad) input + two (BLOCK_P, 128)
    # double-buffered outputs + slack.  No O(N^2) intermediate exists, so this
    # is tiny; the 48 MiB cap is safe on v5e/v6e (128 MiB) and v7x (64 MiB).
    needed = 2 * BLOCK_P * N_pad * 4 + 4 * BLOCK_P * _CHUNK * 4 + (4 << 20)
    vmem_limit = int(min(max(needed, 16 << 20), 48 << 20))

    cost = pl.CostEstimate(
        flops=int(3 * P_pad * N_pad * N_pad),
        transcendentals=0,
        bytes_accessed=int(P_pad * N_pad * 4 + 3 * P_pad * _CHUNK * 4))

    med_out, cnt_out = pl.pallas_call(
        _median_count_kernel,
        out_shape=(jax.ShapeDtypeStruct((P_pad, _CHUNK), jnp.float32),
                   jax.ShapeDtypeStruct((P_pad, _CHUNK), jnp.float32)),
        grid_spec=pltpu.PrefetchScalarGridSpec(
            num_scalar_prefetch=0,
            grid=grid,
            in_specs=[pl.BlockSpec((BLOCK_P, N_pad), lambda g: (g, 0))],
            out_specs=[pl.BlockSpec((BLOCK_P, _CHUNK), lambda g: (g, 0)),
                       pl.BlockSpec((BLOCK_P, _CHUNK), lambda g: (g, 0))]),
        compiler_params=pltpu.CompilerParams(
            dimension_semantics=("parallel",),
            vmem_limit_bytes=vmem_limit),
        cost_estimate=cost,
    )(amounts)

    # Phase 2 consumes Phase-1 outputs directly (no host-side gather/scatter
    # glue between the two pallas_calls).
    kernel2 = functools.partial(
        _scale_kernel,
        quorum=float(quorum),
        total_amount=float(total_amount),
        min_amount=float(min_amount),
        num_iterations=int(num_iterations))
    out = pl.pallas_call(
        kernel2,
        out_shape=jax.ShapeDtypeStruct((P_pad, _CHUNK), jnp.float32),
        in_specs=[pl.BlockSpec(memory_space=pltpu.MemorySpace.VMEM),
                  pl.BlockSpec(memory_space=pltpu.MemorySpace.VMEM)],
        out_specs=pl.BlockSpec(memory_space=pltpu.MemorySpace.VMEM),
    )(med_out, cnt_out)

    return out[:P, 0:1]                        # (P, 1) float32


# --------------------------------------------------------------------------- #
# Pure NumPy mirror of ProjectAllocator.forward / inner_loop (float64).
# --------------------------------------------------------------------------- #
def _reference(vote_lists, *, total_amount, min_amount, quorum, num_iterations):
    total_amount = int(total_amount)
    min_ratio = float(int(min_amount)) / float(total_amount)
    medians, counts = [], []
    for v in vote_lists:
        v = np.sort(np.asarray(v, dtype=np.float64))
        n = len(v)
        medians.append((v[(n - 1) // 2] + v[n // 2]) / 2.0)
        counts.append(n)
    medians = np.asarray(medians, dtype=np.float64).reshape(-1, 1)
    counts = np.asarray(counts, dtype=np.int64).reshape(-1, 1)
    is_eligible = (counts >= quorum).astype(np.float64)
    mask = np.ones_like(medians)
    scaled = np.zeros_like(medians)
    for _ in range(num_iterations):
        eligible = medians * mask * is_eligible
        amount_eligible = eligible.sum()
        ratio = eligible / amount_eligible
        meets = (ratio >= min_ratio).astype(np.float64)
        scaled = total_amount * ratio * meets
        mask = meets
    return scaled.astype(np.float32)


if __name__ == "__main__":
    key = jax.random.PRNGKey(0)

    # Small synthetic vote data: 6 projects, 3..10 integer bids each.
    num_projects = 6
    bid_counts = [3, 5, 8, 4, 10, 6]
    vote_lists = []
    for p in range(num_projects):
        key, sub = jax.random.split(key)
        bids = jax.random.randint(sub, (bid_counts[p],), 100, 5001)
        vote_lists.append(np.asarray(bids, dtype=np.int64))

    total_amount = 30_000
    min_amount = 1_500
    quorum = 4
    num_iterations = 2

    out = project_allocator_forward(
        vote_lists,
        total_amount=total_amount,
        min_amount=min_amount,
        quorum=quorum,
        num_iterations=num_iterations,
    )
    out = jax.block_until_ready(out)

    ref = _reference(
        vote_lists,
        total_amount=total_amount,
        min_amount=min_amount,
        quorum=quorum,
        num_iterations=num_iterations,
    )
    np.testing.assert_allclose(np.asarray(out), ref, rtol=1e-5, atol=1e-3)
    print("KERNEL_OK")
</pallas_src>

<mosaic_0001>
module attributes {stable_mosaic.version = 11 : i64} {
  func.func @_median_count_kernel(%arg0: i32, %arg1: memref<8x128xf32, #tpu.memory_space<vmem>>, %arg2: memref<8x128xf32, #tpu.memory_space<vmem>>, %arg3: memref<8x128xf32, #tpu.memory_space<vmem>>) attributes {dimension_semantics = [#tpu.dimension_semantics<parallel>], iteration_bounds = array<i64: 1>, scalar_prefetch = 0 : i64, scratch_operands = 0 : i64, tpu.core_type = #tpu.core_type<tc>, window_params = [{transform_indices = @transform_0, window_bounds = array<i64: 8, 128>}, {transform_indices = @transform_1, window_bounds = array<i64: 8, 128>}, {transform_indices = @transform_2, window_bounds = array<i64: 8, 128>}]} {
    %c0_i32 = arith.constant 0 : i32
    %c1_i32 = arith.constant 1 : i32
    %0 = arith.muli %c0_i32, %c1_i32 : i32
    %c0_i32_0 = arith.constant 0 : i32
    %1 = arith.addi %c0_i32_0, %0 : i32
    %c8_i32 = arith.constant 8 : i32
    %2 = arith.muli %1, %c8_i32 : i32
    %3 = tpu.assume_multiple %2, 8 : i32
    %cst = arith.constant 0.000000e+00 : f32
    %4 = vector.broadcast %cst : f32 to vector<8x1xf32>
    %c0_i32_1 = arith.constant 0 : i32
    %c128_i32 = arith.constant 128 : i32
    %5 = arith.muli %c0_i32_1, %c128_i32 : i32
    %6 = tpu.assume_multiple %5, 128 : i32
    %7 = arith.index_cast %3 : i32 to index
    %8 = arith.index_cast %6 : i32 to index
    %9 = vector.load %arg1[%7, %8] : memref<8x128xf32, #tpu.memory_space<vmem>>, vector<8x128xf32>
    %cst_2 = arith.constant 1.000000e+29 : f32
    %10 = vector.broadcast %cst_2 : f32 to vector<8x128xf32>
    %11 = arith.cmpf olt, %9, %10 : vector<8x128xf32>
    %12 = arith.extui %11 : vector<8x128xi1> to vector<8x128xi32>
    %13 = arith.sitofp %12 : vector<8x128xi32> to vector<8x128xf32>
    %cst_3 = arith.constant dense<0.000000e+00> : vector<8xf32>
    %14 = vector.multi_reduction <add>, %13, %cst_3 [1] : vector<8x128xf32> to vector<8xf32>
    %15 = vector.shape_cast %14 : vector<8xf32> to vector<8x1xf32>
    %16 = arith.addf %4, %15 : vector<8x1xf32>
    %c1_i32_4 = arith.constant 1 : i32
    %cst_5 = arith.constant 1.000000e+00 : f32
    %17 = vector.broadcast %cst_5 : f32 to vector<8x1xf32>
    %18 = arith.subf %16, %17 : vector<8x1xf32>
    %cst_6 = arith.constant 5.000000e-01 : f32
    %19 = vector.broadcast %cst_6 : f32 to vector<8x1xf32>
    %20 = arith.mulf %18, %19 : vector<8x1xf32>
    %21 = math.floor %20 : vector<8x1xf32>
    %cst_7 = arith.constant 5.000000e-01 : f32
    %22 = vector.broadcast %cst_7 : f32 to vector<8x1xf32>
    %23 = arith.mulf %16, %22 : vector<8x1xf32>
    %24 = math.floor %23 : vector<8x1xf32>
    %cst_8 = arith.constant -1.000000e+30 : f32
    %25 = vector.broadcast %cst_8 : f32 to vector<8x1xf32>
    %c0_i32_9 = arith.constant 0 : i32
    %c128_i32_10 = arith.constant 128 : i32
    %26 = arith.muli %c0_i32_9, %c128_i32_10 : i32
    %27 = tpu.assume_multiple %26, 128 : i32
    %28 = arith.index_cast %3 : i32 to index
    %29 = arith.index_cast %27 : i32 to index
    %30 = vector.load %arg1[%28, %29] : memref<8x128xf32, #tpu.memory_space<vmem>>, vector<8x128xf32>
    %cst_11 = arith.constant 0.000000e+00 : f32
    %31 = vector.broadcast %cst_11 : f32 to vector<8x128xf32>
    %c0_i32_12 = arith.constant 0 : i32
    %c128_i32_13 = arith.constant 128 : i32
    %32 = arith.muli %c0_i32_12, %c128_i32_13 : i32
    %33 = tpu.assume_multiple %32, 128 : i32
    %34 = arith.index_cast %3 : i32 to index
    %35 = arith.index_cast %33 : i32 to index
    %36 = vector.load %arg1[%34, %35] : memref<8x128xf32, #tpu.memory_space<vmem>>, vector<8x128xf32>
    %cst_14 = arith.constant 0.000000e+00 : f32
    %37 = vector.broadcast %cst_14 : f32 to vector<8x128xf32>
    %cst_15 = arith.constant 0.000000e+00 : f32
    %38 = vector.broadcast %cst_15 : f32 to vector<8x128xf32>
    %cst_16 = arith.constant 0.000000e+00 : f32
    %39 = vector.broadcast %cst_16 : f32 to vector<8x128xf32>
    %cst_17 = arith.constant 0.000000e+00 : f32
    %40 = vector.broadcast %cst_17 : f32 to vector<8x128xf32>
    %cst_18 = arith.constant 0.000000e+00 : f32
    %41 = vector.broadcast %cst_18 : f32 to vector<8x128xf32>
    %cst_19 = arith.constant 0.000000e+00 : f32
    %42 = vector.broadcast %cst_19 : f32 to vector<8x128xf32>
    %cst_20 = arith.constant 0.000000e+00 : f32
    %43 = vector.broadcast %cst_20 : f32 to vector<8x128xf32>
    %cst_21 = arith.constant 0.000000e+00 : f32
    %44 = vector.broadcast %cst_21 : f32 to vector<8x128xf32>
    %45 = arith.cmpf olt, %36, %30 : vector<8x128xf32>
    %46 = arith.extui %45 : vector<8x128xi1> to vector<8x128xi32>
    %47 = arith.sitofp %46 : vector<8x128xi32> to vector<8x128xf32>
    %48 = arith.addf %37, %47 : vector<8x128xf32>
    %c1_i32_22 = arith.constant 1 : i32
    %49 = tpu.dynamic_rotate %36 by %c1_i32_22 dim 1 : vector<8x128xf32>, i32 -> vector<8x128xf32>
    %50 = arith.cmpf olt, %49, %30 : vector<8x128xf32>
    %51 = arith.extui %50 : vector<8x128xi1> to vector<8x128xi32>
    %52 = arith.sitofp %51 : vector<8x128xi32> to vector<8x128xf32>
    %53 = arith.addf %38, %52 : vector<8x128xf32>
    %c2_i32 = arith.constant 2 : i32
    %54 = tpu.dynamic_rotate %36 by %c2_i32 dim 1 : vector<8x128xf32>, i32 -> vector<8x128xf32>
    %55 = arith.cmpf olt, %54, %30 : vector<8x128xf32>
    %56 = arith.extui %55 : vector<8x128xi1> to vector<8x128xi32>
    %57 = arith.sitofp %56 : vector<8x128xi32> to vector<8x128xf32>
    %58 = arith.addf %39, %57 : vector<8x128xf32>
    %c3_i32 = arith.constant 3 : i32
    %59 = tpu.dynamic_rotate %36 by %c3_i32 dim 1 : vector<8x128xf32>, i32 -> vector<8x128xf32>
    %60 = arith.cmpf olt, %59, %30 : vector<8x128xf32>
    %61 = arith.extui %60 : vector<8x128xi1> to vector<8x128xi32>
    %62 = arith.sitofp %61 : vector<8x128xi32> to vector<8x128xf32>
    %63 = arith.addf %40, %62 : vector<8x128xf32>
    %c4_i32 = arith.constant 4 : i32
    %64 = tpu.dynamic_rotate %36 by %c4_i32 dim 1 : vector<8x128xf32>, i32 -> vector<8x128xf32>
    %65 = arith.cmpf olt, %64, %30 : vector<8x128xf32>
    %66 = arith.extui %65 : vector<8x128xi1> to vector<8x128xi32>
    %67 = arith.sitofp %66 : vector<8x128xi32> to vector<8x128xf32>
    %68 = arith.addf %41, %67 : vector<8x128xf32>
    %c5_i32 = arith.constant 5 : i32
    %69 = tpu.dynamic_rotate %36 by %c5_i32 dim 1 : vector<8x128xf32>, i32 -> vector<8x128xf32>
    %70 = arith.cmpf olt, %69, %30 : vector<8x128xf32>
    %71 = arith.extui %70 : vector<8x128xi1> to vector<8x128xi32>
    %72 = arith.sitofp %71 : vector<8x128xi32> to vector<8x128xf32>
    %73 = arith.addf %42, %72 : vector<8x128xf32>
    %c6_i32 = arith.constant 6 : i32
    %74 = tpu.dynamic_rotate %36 by %c6_i32 dim 1 : vector<8x128xf32>, i32 -> vector<8x128xf32>
    %75 = arith.cmpf olt, %74, %30 : vector<8x128xf32>
    %76 = arith.extui %75 : vector<8x128xi1> to vector<8x128xi32>
    %77 = arith.sitofp %76 : vector<8x128xi32> to vector<8x128xf32>
    %78 = arith.addf %43, %77 : vector<8x128xf32>
    %c7_i32 = arith.constant 7 : i32
    %79 = tpu.dynamic_rotate %36 by %c7_i32 dim 1 : vector<8x128xf32>, i32 -> vector<8x128xf32>
    %80 = arith.cmpf olt, %79, %30 : vector<8x128xf32>
    %81 = arith.extui %80 : vector<8x128xi1> to vector<8x128xi32>
    %82 = arith.sitofp %81 : vector<8x128xi32> to vector<8x128xf32>
    %83 = arith.addf %44, %82 : vector<8x128xf32>
    %c8_i32_23 = arith.constant 8 : i32
    %84 = tpu.dynamic_rotate %36 by %c8_i32_23 dim 1 : vector<8x128xf32>, i32 -> vector<8x128xf32>
    %85 = arith.cmpf olt, %84, %30 : vector<8x128xf32>
    %86 = arith.extui %85 : vector<8x128xi1> to vector<8x128xi32>
    %87 = arith.sitofp %86 : vector<8x128xi32> to vector<8x128xf32>
    %88 = arith.addf %48, %87 : vector<8x128xf32>
    %c9_i32 = arith.constant 9 : i32
    %89 = tpu.dynamic_rotate %36 by %c9_i32 dim 1 : vector<8x128xf32>, i32 -> vector<8x128xf32>
    %90 = arith.cmpf olt, %89, %30 : vector<8x128xf32>
    %91 = arith.extui %90 : vector<8x128xi1> to vector<8x128xi32>
    %92 = arith.sitofp %91 : vector<8x128xi32> to vector<8x128xf32>
    %93 = arith.addf %53, %92 : vector<8x128xf32>
    %c10_i32 = arith.constant 10 : i32
    %94 = tpu.dynamic_rotate %36 by %c10_i32 dim 1 : vector<8x128xf32>, i32 -> vector<8x128xf32>
    %95 = arith.cmpf olt, %94, %30 : vector<8x128xf32>
    %96 = arith.extui %95 : vector<8x128xi1> to vector<8x128xi32>
    %97 = arith.sitofp %96 : vector<8x128xi32> to vector<8x128xf32>
    %98 = arith.addf %58, %97 : vector<8x128xf32>
    %c11_i32 = arith.constant 11 : i32
    %99 = tpu.dynamic_rotate %36 by %c11_i32 dim 1 : vector<8x128xf32>, i32 -> vector<8x128xf32>
    %100 = arith.cmpf olt, %99, %30 : vector<8x128xf32>
    %101 = arith.extui %100 : vector<8x128xi1> to vector<8x128xi32>
    %102 = arith.sitofp %101 : vector<8x128xi32> to vector<8x128xf32>
    %103 = arith.addf %63, %102 : vector<8x128xf32>
    %c12_i32 = arith.constant 12 : i32
    %104 = tpu.dynamic_rotate %36 by %c12_i32 dim 1 : vector<8x128xf32>, i32 -> vector<8x128xf32>
    %105 = arith.cmpf olt, %104, %30 : vector<8x128xf32>
    %106 = arith.extui %105 : vector<8x128xi1> to vector<8x128xi32>
    %107 = arith.sitofp %106 : vector<8x128xi32> to vector<8x128xf32>
    %108 = arith.addf %68, %107 : vector<8x128xf32>
    %c13_i32 = arith.constant 13 : i32
    %109 = tpu.dynamic_rotate %36 by %c13_i32 dim 1 : vector<8x128xf32>, i32 -> vector<8x128xf32>
    %110 = arith.cmpf olt, %109, %30 : vector<8x128xf32>
    %111 = arith.extui %110 : vector<8x128xi1> to vector<8x128xi32>
    %112 = arith.sitofp %111 : vector<8x128xi32> to vector<8x128xf32>
    %113 = arith.addf %73, %112 : vector<8x128xf32>
    %c14_i32 = arith.constant 14 : i32
    %114 = tpu.dynamic_rotate %36 by %c14_i32 dim 1 : vector<8x128xf32>, i32 -> vector<8x128xf32>
    %115 = arith.cmpf olt, %114, %30 : vector<8x128xf32>
    %116 = arith.extui %115 : vector<8x128xi1> to vector<8x128xi32>
    %117 = arith.sitofp %116 : vector<8x128xi32> to vector<8x128xf32>
    %118 = arith.addf %78, %117 : vector<8x128xf32>
    %c15_i32 = arith.constant 15 : i32
    %119 = tpu.dynamic_rotate %36 by %c15_i32 dim 1 : vector<8x128xf32>, i32 -> vector<8x128xf32>
    %120 = arith.cmpf olt, %119, %30 : vector<8x128xf32>
    %121 = arith.extui %120 : vector<8x128xi1> to vector<8x128xi32>
    %122 = arith.sitofp %121 : vector<8x128xi32> to vector<8x128xf32>
    %123 = arith.addf %83, %122 : vector<8x128xf32>
    %c16_i32 = arith.constant 16 : i32
    %124 = tpu.dynamic_rotate %36 by %c16_i32 dim 1 : vector<8x128xf32>, i32 -> vector<8x128xf32>
    %125 = arith.cmpf olt, %124, %30 : vector<8x128xf32>
    %126 = arith.extui %125 : vector<8x128xi1> to vector<8x128xi32>
    %127 = arith.sitofp %126 : vector<8x128xi32> to vector<8x128xf32>
    %128 = arith.addf %88, %127 : vector<8x128xf32>
    %c17_i32 = arith.constant 17 : i32
    %129 = tpu.dynamic_rotate %36 by %c17_i32 dim 1 : vector<8x128xf32>, i32 -> vector<8x128xf32>
    %130 = arith.cmpf olt, %129, %30 : vector<8x128xf32>
    %131 = arith.extui %130 : vector<8x128xi1> to vector<8x128xi32>
    %132 = arith.sitofp %131 : vector<8x128xi32> to vector<8x128xf32>
    %133 = arith.addf %93, %132 : vector<8x128xf32>
    %c18_i32 = arith.constant 18 : i32
    %134 = tpu.dynamic_rotate %36 by %c18_i32 dim 1 : vector<8x128xf32>, i32 -> vector<8x128xf32>
    %135 = arith.cmpf olt, %134, %30 : vector<8x128xf32>
    %136 = arith.extui %135 : vector<8x128xi1> to vector<8x128xi32>
    %137 = arith.sitofp %136 : vector<8x128xi32> to vector<8x128xf32>
    %138 = arith.addf %98, %137 : vector<8x128xf32>
    %c19_i32 = arith.constant 19 : i32
    %139 = tpu.dynamic_rotate %36 by %c19_i32 dim 1 : vector<8x128xf32>, i32 -> vector<8x128xf32>
    %140 = arith.cmpf olt, %139, %30 : vector<8x128xf32>
    %141 = arith.extui %140 : vector<8x128xi1> to vector<8x128xi32>
    %142 = arith.sitofp %141 : vector<8x128xi32> to vector<8x128xf32>
    %143 = arith.addf %103, %142 : vector<8x128xf32>
    %c20_i32 = arith.constant 20 : i32
    %144 = tpu.dynamic_rotate %36 by %c20_i32 dim 1 : vector<8x128xf32>, i32 -> vector<8x128xf32>
    %145 = arith.cmpf olt, %144, %30 : vector<8x128xf32>
    %146 = arith.extui %145 : vector<8x128xi1> to vector<8x128xi32>
    %147 = arith.sitofp %146 : vector<8x128xi32> to vector<8x128xf32>
    %148 = arith.addf %108, %147 : vector<8x128xf32>
    %c21_i32 = arith.constant 21 : i32
    %149 = tpu.dynamic_rotate %36 by %c21_i32 dim 1 : vector<8x128xf32>, i32 -> vector<8x128xf32>
    %150 = arith.cmpf olt, %149, %30 : vector<8x128xf32>
    %151 = arith.extui %150 : vector<8x128xi1> to vector<8x128xi32>
    %152 = arith.sitofp %151 : vector<8x128xi32> to vector<8x128xf32>
    %153 = arith.addf %113, %152 : vector<8x128xf32>
    %c22_i32 = arith.constant 22 : i32
    %154 = tpu.dynamic_rotate %36 by %c22_i32 dim 1 : vector<8x128xf32>, i32 -> vector<8x128xf32>
    %155 = arith.cmpf olt, %154, %30 : vector<8x128xf32>
    %156 = arith.extui %155 : vector<8x128xi1> to vector<8x128xi32>
    %157 = arith.sitofp %156 : vector<8x128xi32> to vector<8x128xf32>
    %158 = arith.addf %118, %157 : vector<8x128xf32>
    %c23_i32 = arith.constant 23 : i32
    %159 = tpu.dynamic_rotate %36 by %c23_i32 dim 1 : vector<8x128xf32>, i32 -> vector<8x128xf32>
    %160 = arith.cmpf olt, %159, %30 : vector<8x128xf32>
    %161 = arith.extui %160 : vector<8x128xi1> to vector<8x128xi32>
    %162 = arith.sitofp %161 : vector<8x128xi32> to vector<8x128xf32>
    %163 = arith.addf %123, %162 : vector<8x128xf32>
    %c24_i32 = arith.constant 24 : i32
    %164 = tpu.dynamic_rotate %36 by %c24_i32 dim 1 : vector<8x128xf32>, i32 -> vector<8x128xf32>
    %165 = arith.cmpf olt, %164, %30 : vector<8x128xf32>
    %166 = arith.extui %165 : vector<8x128xi1> to vector<8x128xi32>
    %167 = arith.sitofp %166 : vector<8x128xi32> to vector<8x128xf32>
    %168 = arith.addf %128, %167 : vector<8x128xf32>
    %c25_i32 = arith.constant 25 : i32
    %169 = tpu.dynamic_rotate %36 by %c25_i32 dim 1 : vector<8x128xf32>, i32 -> vector<8x128xf32>
    %170 = arith.cmpf olt, %169, %30 : vector<8x128xf32>
    %171 = arith.extui %170 : vector<8x128xi1> to vector<8x128xi32>
    %172 = arith.sitofp %171 : vector<8x128xi32> to vector<8x128xf32>
    %173 = arith.addf %133, %172 : vector<8x128xf32>
    %c26_i32 = arith.constant 26 : i32
    %174 = tpu.dynamic_rotate %36 by %c26_i32 dim 1 : vector<8x128xf32>, i32 -> vector<8x128xf32>
    %175 = arith.cmpf olt, %174, %30 : vector<8x128xf32>
    %176 = arith.extui %175 : vector<8x128xi1> to vector<8x128xi32>
    %177 = arith.sitofp %176 : vector<8x128xi32> to vector<8x128xf32>
    %178 = arith.addf %138, %177 : vector<8x128xf32>
    %c27_i32 = arith.constant 27 : i32
    %179 = tpu.dynamic_rotate %36 by %c27_i32 dim 1 : vector<8x128xf32>, i32 -> vector<8x128xf32>
    %180 = arith.cmpf olt, %179, %30 : vector<8x128xf32>
    %181 = arith.extui %180 : vector<8x128xi1> to vector<8x128xi32>
    %182 = arith.sitofp %181 : vector<8x128xi32> to vector<8x128xf32>
    %183 = arith.addf %143, %182 : vector<8x128xf32>
    %c28_i32 = arith.constant 28 : i32
    %184 = tpu.dynamic_rotate %36 by %c28_i32 dim 1 : vector<8x128xf32>, i32 -> vector<8x128xf32>
    %185 = arith.cmpf olt, %184, %30 : vector<8x128xf32>
    %186 = arith.extui %185 : vector<8x128xi1> to vector<8x128xi32>
    %187 = arith.sitofp %186 : vector<8x128xi32> to vector<8x128xf32>
    %188 = arith.addf %148, %187 : vector<8x128xf32>
    %c29_i32 = arith.constant 29 : i32
    %189 = tpu.dynamic_rotate %36 by %c29_i32 dim 1 : vector<8x128xf32>, i32 -> vector<8x128xf32>
    %190 = arith.cmpf olt, %189, %30 : vector<8x128xf32>
    %191 = arith.extui %190 : vector<8x128xi1> to vector<8x128xi32>
    %192 = arith.sitofp %191 : vector<8x128xi32> to vector<8x128xf32>
    %193 = arith.addf %153, %192 : vector<8x128xf32>
    %c30_i32 = arith.constant 30 : i32
    %194 = tpu.dynamic_rotate %36 by %c30_i32 dim 1 : vector<8x128xf32>, i32 -> vector<8x128xf32>
    %195 = arith.cmpf olt, %194, %30 : vector<8x128xf32>
    %196 = arith.extui %195 : vector<8x128xi1> to vector<8x128xi32>
    %197 = arith.sitofp %196 : vector<8x128xi32> to vector<8x128xf32>
    %198 = arith.addf %158, %197 : vector<8x128xf32>
    %c31_i32 = arith.constant 31 : i32
    %199 = tpu.dynamic_rotate %36 by %c31_i32 dim 1 : vector<8x128xf32>, i32 -> vector<8x128xf32>
    %200 = arith.cmpf olt, %199, %30 : vector<8x128xf32>
    %201 = arith.extui %200 : vector<8x128xi1> to vector<8x128xi32>
    %202 = arith.sitofp %201 : vector<8x128xi32> to vector<8x128xf32>
    %203 = arith.addf %163, %202 : vector<8x128xf32>
    %c32_i32 = arith.constant 32 : i32
    %204 = tpu.dynamic_rotate %36 by %c32_i32 dim 1 : vector<8x128xf32>, i32 -> vector<8x128xf32>
    %205 = arith.cmpf olt, %204, %30 : vector<8x128xf32>
    %206 = arith.extui %205 : vector<8x128xi1> to vector<8x128xi32>
    %207 = arith.sitofp %206 : vector<8x128xi32> to vector<8x128xf32>
    %208 = arith.addf %168, %207 : vector<8x128xf32>
    %c33_i32 = arith.constant 33 : i32
    %209 = tpu.dynamic_rotate %36 by %c33_i32 dim 1 : vector<8x128xf32>, i32 -> vector<8x128xf32>
    %210 = arith.cmpf olt, %209, %30 : vector<8x128xf32>
    %211 = arith.extui %210 : vector<8x128xi1> to vector<8x128xi32>
    %212 = arith.sitofp %211 : vector<8x128xi32> to vector<8x128xf32>
    %213 = arith.addf %173, %212 : vector<8x128xf32>
    %c34_i32 = arith.constant 34 : i32
    %214 = tpu.dynamic_rotate %36 by %c34_i32 dim 1 : vector<8x128xf32>, i32 -> vector<8x128xf32>
    %215 = arith.cmpf olt, %214, %30 : vector<8x128xf32>
    %216 = arith.extui %215 : vector<8x128xi1> to vector<8x128xi32>
    %217 = arith.sitofp %216 : vector<8x128xi32> to vector<8x128xf32>
    %218 = arith.addf %178, %217 : vector<8x128xf32>
    %c35_i32 = arith.constant 35 : i32
    %219 = tpu.dynamic_rotate %36 by %c35_i32 dim 1 : vector<8x128xf32>, i32 -> vector<8x128xf32>
    %220 = arith.cmpf olt, %219, %30 : vector<8x128xf32>
    %221 = arith.extui %220 : vector<8x128xi1> to vector<8x128xi32>
    %222 = arith.sitofp %221 : vector<8x128xi32> to vector<8x128xf32>
    %223 = arith.addf %183, %222 : vector<8x128xf32>
    %c36_i32 = arith.constant 36 : i32
    %224 = tpu.dynamic_rotate %36 by %c36_i32 dim 1 : vector<8x128xf32>, i32 -> vector<8x128xf32>
    %225 = arith.cmpf olt, %224, %30 : vector<8x128xf32>
    %226 = arith.extui %225 : vector<8x128xi1> to vector<8x128xi32>
    %227 = arith.sitofp %226 : vector<8x128xi32> to vector<8x128xf32>
    %228 = arith.addf %188, %227 : vector<8x128xf32>
    %c37_i32 = arith.constant 37 : i32
    %229 = tpu.dynamic_rotate %36 by %c37_i32 dim 1 : vector<8x128xf32>, i32 -> vector<8x128xf32>
    %230 = arith.cmpf olt, %229, %30 : vector<8x128xf32>
    %231 = arith.extui %230 : vector<8x128xi1> to vector<8x128xi32>
    %232 = arith.sitofp %231 : vector<8x128xi32> to vector<8x128xf32>
    %233 = arith.addf %193, %232 : vector<8x128xf32>
    %c38_i32 = arith.constant 38 : i32
    %234 = tpu.dynamic_rotate %36 by %c38_i32 dim 1 : vector<8x128xf32>, i32 -> vector<8x128xf32>
    %235 = arith.cmpf olt, %234, %30 : vector<8x128xf32>
    %236 = arith.extui %235 : vector<8x128xi1> to vector<8x128xi32>
    %237 = arith.sitofp %236 : vector<8x128xi32> to vector<8x128xf32>
    %238 = arith.addf %198, %237 : vector<8x128xf32>
    %c39_i32 = arith.constant 39 : i32
    %239 = tpu.dynamic_rotate %36 by %c39_i32 dim 1 : vector<8x128xf32>, i32 -> vector<8x128xf32>
    %240 = arith.cmpf olt, %239, %30 : vector<8x128xf32>
    %241 = arith.extui %240 : vector<8x128xi1> to vector<8x128xi32>
    %242 = arith.sitofp %241 : vector<8x128xi32> to vector<8x128xf32>
    %243 = arith.addf %203, %242 : vector<8x128xf32>
    %c40_i32 = arith.constant 40 : i32
    %244 = tpu.dynamic_rotate %36 by %c40_i32 dim 1 : vector<8x128xf32>, i32 -> vector<8x128xf32>
    %245 = arith.cmpf olt, %244, %30 : vector<8x128xf32>
    %246 = arith.extui %245 : vector<8x128xi1> to vector<8x128xi32>
    %247 = arith.sitofp %246 : vector<8x128xi32> to vector<8x128xf32>
    %248 = arith.addf %208, %247 : vector<8x128xf32>
    %c41_i32 = arith.constant 41 : i32
    %249 = tpu.dynamic_rotate %36 by %c41_i32 dim 1 : vector<8x128xf32>, i32 -> vector<8x128xf32>
    %250 = arith.cmpf olt, %249, %30 : vector<8x128xf32>
    %251 = arith.extui %250 : vector<8x128xi1> to vector<8x128xi32>
    %252 = arith.sitofp %251 : vector<8x128xi32> to vector<8x128xf32>
    %253 = arith.addf %213, %252 : vector<8x128xf32>
    %c42_i32 = arith.constant 42 : i32
    %254 = tpu.dynamic_rotate %36 by %c42_i32 dim 1 : vector<8x128xf32>, i32 -> vector<8x128xf32>
    %255 = arith.cmpf olt, %254, %30 : vector<8x128xf32>
    %256 = arith.extui %255 : vector<8x128xi1> to vector<8x128xi32>
    %257 = arith.sitofp %256 : vector<8x128xi32> to vector<8x128xf32>
    %258 = arith.addf %218, %257 : vector<8x128xf32>
    %c43_i32 = arith.constant 43 : i32
    %259 = tpu.dynamic_rotate %36 by %c43_i32 dim 1 : vector<8x128xf32>, i32 -> vector<8x128xf32>
    %260 = arith.cmpf olt, %259, %30 : vector<8x128xf32>
    %261 = arith.extui %260 : vector<8x128xi1> to vector<8x128xi32>
    %262 = arith.sitofp %261 : vector<8x128xi32> to vector<8x128xf32>
    %263 = arith.addf %223, %262 : vector<8x128xf32>
    %c44_i32 = arith.constant 44 : i32
    %264 = tpu.dynamic_rotate %36 by %c44_i32 dim 1 : vector<8x128xf32>, i32 -> vector<8x128xf32>
    %265 = arith.cmpf olt, %264, %30 : vector<8x128xf32>
    %266 = arith.extui %265 : vector<8x128xi1> to vector<8x128xi32>
    %267 = arith.sitofp %266 : vector<8x128xi32> to vector<8x128xf32>
    %268 = arith.addf %228, %267 : vector<8x128xf32>
    %c45_i32 = arith.constant 45 : i32
    %269 = tpu.dynamic_rotate %36 by %c45_i32 dim 1 : vector<8x128xf32>, i32 -> vector<8x128xf32>
    %270 = arith.cmpf olt, %269, %30 : vector<8x128xf32>
    %271 = arith.extui %270 : vector<8x128xi1> to vector<8x128xi32>
    %272 = arith.sitofp %271 : vector<8x128xi32> to vector<8x128xf32>
    %273 = arith.addf %233, %272 : vector<8x128xf32>
    %c46_i32 = arith.constant 46 : i32
    %274 = tpu.dynamic_rotate %36 by %c46_i32 dim 1 : vector<8x128xf32>, i32 -> vector<8x128xf32>
    %275 = arith.cmpf olt, %274, %30 : vector<8x128xf32>
    %276 = arith.extui %275 : vector<8x128xi1> to vector<8x128xi32>
    %277 = arith.sitofp %276 : vector<8x128xi32> to vector<8x128xf32>
    %278 = arith.addf %238, %277 : vector<8x128xf32>
    %c47_i32 = arith.constant 47 : i32
    %279 = tpu.dynamic_rotate %36 by %c47_i32 dim 1 : vector<8x128xf32>, i32 -> vector<8x128xf32>
    %280 = arith.cmpf olt, %279, %30 : vector<8x128xf32>
    %281 = arith.extui %280 : vector<8x128xi1> to vector<8x128xi32>
    %282 = arith.sitofp %281 : vector<8x128xi32> to vector<8x128xf32>
    %283 = arith.addf %243, %282 : vector<8x128xf32>
    %c48_i32 = arith.constant 48 : i32
    %284 = tpu.dynamic_rotate %36 by %c48_i32 dim 1 : vector<8x128xf32>, i32 -> vector<8x128xf32>
    %285 = arith.cmpf olt, %284, %30 : vector<8x128xf32>
    %286 = arith.extui %285 : vector<8x128xi1> to vector<8x128xi32>
    %287 = arith.sitofp %286 : vector<8x128xi32> to vector<8x128xf32>
    %288 = arith.addf %248, %287 : vector<8x128xf32>
    %c49_i32 = arith.constant 49 : i32
    %289 = tpu.dynamic_rotate %36 by %c49_i32 dim 1 : vector<8x128xf32>, i32 -> vector<8x128xf32>
    %290 = arith.cmpf olt, %289, %30 : vector<8x128xf32>
    %291 = arith.extui %290 : vector<8x128xi1> to vector<8x128xi32>
    %292 = arith.sitofp %291 : vector<8x128xi32> to vector<8x128xf32>
    %293 = arith.addf %253, %292 : vector<8x128xf32>
    %c50_i32 = arith.constant 50 : i32
    %294 = tpu.dynamic_rotate %36 by %c50_i32 dim 1 : vector<8x128xf32>, i32 -> vector<8x128xf32>
    %295 = arith.cmpf olt, %294, %30 : vector<8x128xf32>
    %296 = arith.extui %295 : vector<8x128xi1> to vector<8x128xi32>
    %297 = arith.sitofp %296 : vector<8x128xi32> to vector<8x128xf32>
    %298 = arith.addf %258, %297 : vector<8x128xf32>
    %c51_i32 = arith.constant 51 : i32
    %299 = tpu.dynamic_rotate %36 by %c51_i32 dim 1 : vector<8x128xf32>, i32 -> vector<8x128xf32>
    %300 = arith.cmpf olt, %299, %30 : vector<8x128xf32>
    %301 = arith.extui %300 : vector<8x128xi1> to vector<8x128xi32>
    %302 = arith.sitofp %301 : vector<8x128xi32> to vector<8x128xf32>
    %303 = arith.addf %263, %302 : vector<8x128xf32>
    %c52_i32 = arith.constant 52 : i32
    %304 = tpu.dynamic_rotate %36 by %c52_i32 dim 1 : vector<8x128xf32>, i32 -> vector<8x128xf32>
    %305 = arith.cmpf olt, %304, %30 : vector<8x128xf32>
    %306 = arith.extui %305 : vector<8x128xi1> to vector<8x128xi32>
    %307 = arith.sitofp %306 : vector<8x128xi32> to vector<8x128xf32>
    %308 = arith.addf %268, %307 : vector<8x128xf32>
    %c53_i32 = arith.constant 53 : i32
    %309 = tpu.dynamic_rotate %36 by %c53_i32 dim 1 : vector<8x128xf32>, i32 -> vector<8x128xf32>
    %310 = arith.cmpf olt, %309, %30 : vector<8x128xf32>
    %311 = arith.extui %310 : vector<8x128xi1> to vector<8x128xi32>
    %312 = arith.sitofp %311 : vector<8x128xi32> to vector<8x128xf32>
    %313 = arith.addf %273, %312 : vector<8x128xf32>
    %c54_i32 = arith.constant 54 : i32
    %314 = tpu.dynamic_rotate %36 by %c54_i32 dim 1 : vector<8x128xf32>, i32 -> vector<8x128xf32>
    %315 = arith.cmpf olt, %314, %30 : vector<8x128xf32>
    %316 = arith.extui %315 : vector<8x128xi1> to vector<8x128xi32>
    %317 = arith.sitofp %316 : vector<8x128xi32> to vector<8x128xf32>
    %318 = arith.addf %278, %317 : vector<8x128xf32>
    %c55_i32 = arith.constant 55 : i32
    %319 = tpu.dynamic_rotate %36 by %c55_i32 dim 1 : vector<8x128xf32>, i32 -> vector<8x128xf32>
    %320 = arith.cmpf olt, %319, %30 : vector<8x128xf32>
    %321 = arith.extui %320 : vector<8x128xi1> to vector<8x128xi32>
    %322 = arith.sitofp %321 : vector<8x128xi32> to vector<8x128xf32>
    %323 = arith.addf %283, %322 : vector<8x128xf32>
    %c56_i32 = arith.constant 56 : i32
    %324 = tpu.dynamic_rotate %36 by %c56_i32 dim 1 : vector<8x128xf32>, i32 -> vector<8x128xf32>
    %325 = arith.cmpf olt, %324, %30 : vector<8x128xf32>
    %326 = arith.extui %325 : vector<8x128xi1> to vector<8x128xi32>
    %327 = arith.sitofp %326 : vector<8x128xi32> to vector<8x128xf32>
    %328 = arith.addf %288, %327 : vector<8x128xf32>
    %c57_i32 = arith.constant 57 : i32
    %329 = tpu.dynamic_rotate %36 by %c57_i32 dim 1 : vector<8x128xf32>, i32 -> vector<8x128xf32>
    %330 = arith.cmpf olt, %329, %30 : vector<8x128xf32>
    %331 = arith.extui %330 : vector<8x128xi1> to vector<8x128xi32>
    %332 = arith.sitofp %331 : vector<8x128xi32> to vector<8x128xf32>
    %333 = arith.addf %293, %332 : vector<8x128xf32>
    %c58_i32 = arith.constant 58 : i32
    %334 = tpu.dynamic_rotate %36 by %c58_i32 dim 1 : vector<8x128xf32>, i32 -> vector<8x128xf32>
    %335 = arith.cmpf olt, %334, %30 : vector<8x128xf32>
    %336 = arith.extui %335 : vector<8x128xi1> to vector<8x128xi32>
    %337 = arith.sitofp %336 : vector<8x128xi32> to vector<8x128xf32>
    %338 = arith.addf %298, %337 : vector<8x128xf32>
    %c59_i32 = arith.constant 59 : i32
    %339 = tpu.dynamic_rotate %36 by %c59_i32 dim 1 : vector<8x128xf32>, i32 -> vector<8x128xf32>
    %340 = arith.cmpf olt, %339, %30 : vector<8x128xf32>
    %341 = arith.extui %340 : vector<8x128xi1> to vector<8x128xi32>
    %342 = arith.sitofp %341 : vector<8x128xi32> to vector<8x128xf32>
    %343 = arith.addf %303, %342 : vector<8x128xf32>
    %c60_i32 = arith.constant 60 : i32
    %344 = tpu.dynamic_rotate %36 by %c60_i32 dim 1 : vector<8x128xf32>, i32 -> vector<8x128xf32>
    %345 = arith.cmpf olt, %344, %30 : vector<8x128xf32>
    %346 = arith.extui %345 : vector<8x128xi1> to vector<8x128xi32>
    %347 = arith.sitofp %346 : vector<8x128xi32> to vector<8x128xf32>
    %348 = arith.addf %308, %347 : vector<8x128xf32>
    %c61_i32 = arith.constant 61 : i32
    %349 = tpu.dynamic_rotate %36 by %c61_i32 dim 1 : vector<8x128xf32>, i32 -> vector<8x128xf32>
    %350 = arith.cmpf olt, %349, %30 : vector<8x128xf32>
    %351 = arith.extui %350 : vector<8x128xi1> to vector<8x128xi32>
    %352 = arith.sitofp %351 : vector<8x128xi32> to vector<8x128xf32>
    %353 = arith.addf %313, %352 : vector<8x128xf32>
    %c62_i32 = arith.constant 62 : i32
    %354 = tpu.dynamic_rotate %36 by %c62_i32 dim 1 : vector<8x128xf32>, i32 -> vector<8x128xf32>
    %355 = arith.cmpf olt, %354, %30 : vector<8x128xf32>
    %356 = arith.extui %355 : vector<8x128xi1> to vector<8x128xi32>
    %357 = arith.sitofp %356 : vector<8x128xi32> to vector<8x128xf32>
    %358 = arith.addf %318, %357 : vector<8x128xf32>
    %c63_i32 = arith.constant 63 : i32
    %359 = tpu.dynamic_rotate %36 by %c63_i32 dim 1 : vector<8x128xf32>, i32 -> vector<8x128xf32>
    %360 = arith.cmpf olt, %359, %30 : vector<8x128xf32>
    %361 = arith.extui %360 : vector<8x128xi1> to vector<8x128xi32>
    %362 = arith.sitofp %361 : vector<8x128xi32> to vector<8x128xf32>
    %363 = arith.addf %323, %362 : vector<8x128xf32>
    %c64_i32 = arith.constant 64 : i32
    %364 = tpu.dynamic_rotate %36 by %c64_i32 dim 1 : vector<8x128xf32>, i32 -> vector<8x128xf32>
    %365 = arith.cmpf olt, %364, %30 : vector<8x128xf32>
    %366 = arith.extui %365 : vector<8x128xi1> to vector<8x128xi32>
    %367 = arith.sitofp %366 : vector<8x128xi32> to vector<8x128xf32>
    %368 = arith.addf %328, %367 : vector<8x128xf32>
    %c65_i32 = arith.constant 65 : i32
    %369 = tpu.dynamic_rotate %36 by %c65_i32 dim 1 : vector<8x128xf32>, i32 -> vector<8x128xf32>
    %370 = arith.cmpf olt, %369, %30 : vector<8x128xf32>
    %371 = arith.extui %370 : vector<8x128xi1> to vector<8x128xi32>
    %372 = arith.sitofp %371 : vector<8x128xi32> to vector<8x128xf32>
    %373 = arith.addf %333, %372 : vector<8x128xf32>
    %c66_i32 = arith.constant 66 : i32
    %374 = tpu.dynamic_rotate %36 by %c66_i32 dim 1 : vector<8x128xf32>, i32 -> vector<8x128xf32>
    %375 = arith.cmpf olt, %374, %30 : vector<8x128xf32>
    %376 = arith.extui %375 : vector<8x128xi1> to vector<8x128xi32>
    %377 = arith.sitofp %376 : vector<8x128xi32> to vector<8x128xf32>
    %378 = arith.addf %338, %377 : vector<8x128xf32>
    %c67_i32 = arith.constant 67 : i32
    %379 = tpu.dynamic_rotate %36 by %c67_i32 dim 1 : vector<8x128xf32>, i32 -> vector<8x128xf32>
    %380 = arith.cmpf olt, %379, %30 : vector<8x128xf32>
    %381 = arith.extui %380 : vector<8x128xi1> to vector<8x128xi32>
    %382 = arith.sitofp %381 : vector<8x128xi32> to vector<8x128xf32>
    %383 = arith.addf %343, %382 : vector<8x128xf32>
    %c68_i32 = arith.constant 68 : i32
    %384 = tpu.dynamic_rotate %36 by %c68_i32 dim 1 : vector<8x128xf32>, i32 -> vector<8x128xf32>
    %385 = arith.cmpf olt, %384, %30 : vector<8x128xf32>
    %386 = arith.extui %385 : vector<8x128xi1> to vector<8x128xi32>
    %387 = arith.sitofp %386 : vector<8x128xi32> to vector<8x128xf32>
    %388 = arith.addf %348, %387 : vector<8x128xf32>
    %c69_i32 = arith.constant 69 : i32
    %389 = tpu.dynamic_rotate %36 by %c69_i32 dim 1 : vector<8x128xf32>, i32 -> vector<8x128xf32>
    %390 = arith.cmpf olt, %389, %30 : vector<8x128xf32>
    %391 = arith.extui %390 : vector<8x128xi1> to vector<8x128xi32>
    %392 = arith.sitofp %391 : vector<8x128xi32> to vector<8x128xf32>
    %393 = arith.addf %353, %392 : vector<8x128xf32>
    %c70_i32 = arith.constant 70 : i32
    %394 = tpu.dynamic_rotate %36 by %c70_i32 dim 1 : vector<8x128xf32>, i32 -> vector<8x128xf32>
    %395 = arith.cmpf olt, %394, %30 : vector<8x128xf32>
    %396 = arith.extui %395 : vector<8x128xi1> to vector<8x128xi32>
    %397 = arith.sitofp %396 : vector<8x128xi32> to vector<8x128xf32>
    %398 = arith.addf %358, %397 : vector<8x128xf32>
    %c71_i32 = arith.constant 71 : i32
    %399 = tpu.dynamic_rotate %36 by %c71_i32 dim 1 : vector<8x128xf32>, i32 -> vector<8x128xf32>
    %400 = arith.cmpf olt, %399, %30 : vector<8x128xf32>
    %401 = arith.extui %400 : vector<8x128xi1> to vector<8x128xi32>
    %402 = arith.sitofp %401 : vector<8x128xi32> to vector<8x128xf32>
    %403 = arith.addf %363, %402 : vector<8x128xf32>
    %c72_i32 = arith.constant 72 : i32
    %404 = tpu.dynamic_rotate %36 by %c72_i32 dim 1 : vector<8x128xf32>, i32 -> vector<8x128xf32>
    %405 = arith.cmpf olt, %404, %30 : vector<8x128xf32>
    %406 = arith.extui %405 : vector<8x128xi1> to vector<8x128xi32>
    %407 = arith.sitofp %406 : vector<8x128xi32> to vector<8x128xf32>
    %408 = arith.addf %368, %407 : vector<8x128xf32>
    %c73_i32 = arith.constant 73 : i32
    %409 = tpu.dynamic_rotate %36 by %c73_i32 dim 1 : vector<8x128xf32>, i32 -> vector<8x128xf32>
    %410 = arith.cmpf olt, %409, %30 : vector<8x128xf32>
    %411 = arith.extui %410 : vector<8x128xi1> to vector<8x128xi32>
    %412 = arith.sitofp %411 : vector<8x128xi32> to vector<8x128xf32>
    %413 = arith.addf %373, %412 : vector<8x128xf32>
    %c74_i32 = arith.constant 74 : i32
    %414 = tpu.dynamic_rotate %36 by %c74_i32 dim 1 : vector<8x128xf32>, i32 -> vector<8x128xf32>
    %415 = arith.cmpf olt, %414, %30 : vector<8x128xf32>
    %416 = arith.extui %415 : vector<8x128xi1> to vector<8x128xi32>
    %417 = arith.sitofp %416 : vector<8x128xi32> to vector<8x128xf32>
    %418 = arith.addf %378, %417 : vector<8x128xf32>
    %c75_i32 = arith.constant 75 : i32
    %419 = tpu.dynamic_rotate %36 by %c75_i32 dim 1 : vector<8x128xf32>, i32 -> vector<8x128xf32>
    %420 = arith.cmpf olt, %419, %30 : vector<8x128xf32>
    %421 = arith.extui %420 : vector<8x128xi1> to vector<8x128xi32>
    %422 = arith.sitofp %421 : vector<8x128xi32> to vector<8x128xf32>
    %423 = arith.addf %383, %422 : vector<8x128xf32>
    %c76_i32 = arith.constant 76 : i32
    %424 = tpu.dynamic_rotate %36 by %c76_i32 dim 1 : vector<8x128xf32>, i32 -> vector<8x128xf32>
    %425 = arith.cmpf olt, %424, %30 : vector<8x128xf32>
    %426 = arith.extui %425 : vector<8x128xi1> to vector<8x128xi32>
    %427 = arith.sitofp %426 : vector<8x128xi32> to vector<8x128xf32>
    %428 = arith.addf %388, %427 : vector<8x128xf32>
    %c77_i32 = arith.constant 77 : i32
    %429 = tpu.dynamic_rotate %36 by %c77_i32 dim 1 : vector<8x128xf32>, i32 -> vector<8x128xf32>
    %430 = arith.cmpf olt, %429, %30 : vector<8x128xf32>
    %431 = arith.extui %430 : vector<8x128xi1> to vector<8x128xi32>
    %432 = arith.sitofp %431 : vector<8x128xi32> to vector<8x128xf32>
    %433 = arith.addf %393, %432 : vector<8x128xf32>
    %c78_i32 = arith.constant 78 : i32
    %434 = tpu.dynamic_rotate %36 by %c78_i32 dim 1 : vector<8x128xf32>, i32 -> vector<8x128xf32>
    %435 = arith.cmpf olt, %434, %30 : vector<8x128xf32>
    %436 = arith.extui %435 : vector<8x128xi1> to vector<8x128xi32>
    %437 = arith.sitofp %436 : vector<8x128xi32> to vector<8x128xf32>
    %438 = arith.addf %398, %437 : vector<8x128xf32>
    %c79_i32 = arith.constant 79 : i32
    %439 = tpu.dynamic_rotate %36 by %c79_i32 dim 1 : vector<8x128xf32>, i32 -> vector<8x128xf32>
    %440 = arith.cmpf olt, %439, %30 : vector<8x128xf32>
    %441 = arith.extui %440 : vector<8x128xi1> to vector<8x128xi32>
    %442 = arith.sitofp %441 : vector<8x128xi32> to vector<8x128xf32>
    %443 = arith.addf %403, %442 : vector<8x128xf32>
    %c80_i32 = arith.constant 80 : i32
    %444 = tpu.dynamic_rotate %36 by %c80_i32 dim 1 : vector<8x128xf32>, i32 -> vector<8x128xf32>
    %445 = arith.cmpf olt, %444, %30 : vector<8x128xf32>
    %446 = arith.extui %445 : vector<8x128xi1> to vector<8x128xi32>
    %447 = arith.sitofp %446 : vector<8x128xi32> to vector<8x128xf32>
    %448 = arith.addf %408, %447 : vector<8x128xf32>
    %c81_i32 = arith.constant 81 : i32
    %449 = tpu.dynamic_rotate %36 by %c81_i32 dim 1 : vector<8x128xf32>, i32 -> vector<8x128xf32>
    %450 = arith.cmpf olt, %449, %30 : vector<8x128xf32>
    %451 = arith.extui %450 : vector<8x128xi1> to vector<8x128xi32>
    %452 = arith.sitofp %451 : vector<8x128xi32> to vector<8x128xf32>
    %453 = arith.addf %413, %452 : vector<8x128xf32>
    %c82_i32 = arith.constant 82 : i32
    %454 = tpu.dynamic_rotate %36 by %c82_i32 dim 1 : vector<8x128xf32>, i32 -> vector<8x128xf32>
    %455 = arith.cmpf olt, %454, %30 : vector<8x128xf32>
    %456 = arith.extui %455 : vector<8x128xi1> to vector<8x128xi32>
    %457 = arith.sitofp %456 : vector<8x128xi32> to vector<8x128xf32>
    %458 = arith.addf %418, %457 : vector<8x128xf32>
    %c83_i32 = arith.constant 83 : i32
    %459 = tpu.dynamic_rotate %36 by %c83_i32 dim 1 : vector<8x128xf32>, i32 -> vector<8x128xf32>
    %460 = arith.cmpf olt, %459, %30 : vector<8x128xf32>
    %461 = arith.extui %460 : vector<8x128xi1> to vector<8x128xi32>
    %462 = arith.sitofp %461 : vector<8x128xi32> to vector<8x128xf32>
    %463 = arith.addf %423, %462 : vector<8x128xf32>
    %c84_i32 = arith.constant 84 : i32
    %464 = tpu.dynamic_rotate %36 by %c84_i32 dim 1 : vector<8x128xf32>, i32 -> vector<8x128xf32>
    %465 = arith.cmpf olt, %464, %30 : vector<8x128xf32>
    %466 = arith.extui %465 : vector<8x128xi1> to vector<8x128xi32>
    %467 = arith.sitofp %466 : vector<8x128xi32> to vector<8x128xf32>
    %468 = arith.addf %428, %467 : vector<8x128xf32>
    %c85_i32 = arith.constant 85 : i32
    %469 = tpu.dynamic_rotate %36 by %c85_i32 dim 1 : vector<8x128xf32>, i32 -> vector<8x128xf32>
    %470 = arith.cmpf olt, %469, %30 : vector<8x128xf32>
    %471 = arith.extui %470 : vector<8x128xi1> to vector<8x128xi32>
    %472 = arith.sitofp %471 : vector<8x128xi32> to vector<8x128xf32>
    %473 = arith.addf %433, %472 : vector<8x128xf32>
    %c86_i32 = arith.constant 86 : i32
    %474 = tpu.dynamic_rotate %36 by %c86_i32 dim 1 : vector<8x128xf32>, i32 -> vector<8x128xf32>
    %475 = arith.cmpf olt, %474, %30 : vector<8x128xf32>
    %476 = arith.extui %475 : vector<8x128xi1> to vector<8x128xi32>
    %477 = arith.sitofp %476 : vector<8x128xi32> to vector<8x128xf32>
    %478 = arith.addf %438, %477 : vector<8x128xf32>
    %c87_i32 = arith.constant 87 : i32
    %479 = tpu.dynamic_rotate %36 by %c87_i32 dim 1 : vector<8x128xf32>, i32 -> vector<8x128xf32>
    %480 = arith.cmpf olt, %479, %30 : vector<8x128xf32>
    %481 = arith.extui %480 : vector<8x128xi1> to vector<8x128xi32>
    %482 = arith.sitofp %481 : vector<8x128xi32> to vector<8x128xf32>
    %483 = arith.addf %443, %482 : vector<8x128xf32>
    %c88_i32 = arith.constant 88 : i32
    %484 = tpu.dynamic_rotate %36 by %c88_i32 dim 1 : vector<8x128xf32>, i32 -> vector<8x128xf32>
    %485 = arith.cmpf olt, %484, %30 : vector<8x128xf32>
    %486 = arith.extui %485 : vector<8x128xi1> to vector<8x128xi32>
    %487 = arith.sitofp %486 : vector<8x128xi32> to vector<8x128xf32>
    %488 = arith.addf %448, %487 : vector<8x128xf32>
    %c89_i32 = arith.constant 89 : i32
    %489 = tpu.dynamic_rotate %36 by %c89_i32 dim 1 : vector<8x128xf32>, i32 -> vector<8x128xf32>
    %490 = arith.cmpf olt, %489, %30 : vector<8x128xf32>
    %491 = arith.extui %490 : vector<8x128xi1> to vector<8x128xi32>
    %492 = arith.sitofp %491 : vector<8x128xi32> to vector<8x128xf32>
    %493 = arith.addf %453, %492 : vector<8x128xf32>
    %c90_i32 = arith.constant 90 : i32
    %494 = tpu.dynamic_rotate %36 by %c90_i32 dim 1 : vector<8x128xf32>, i32 -> vector<8x128xf32>
    %495 = arith.cmpf olt, %494, %30 : vector<8x128xf32>
    %496 = arith.extui %495 : vector<8x128xi1> to vector<8x128xi32>
    %497 = arith.sitofp %496 : vector<8x128xi32> to vector<8x128xf32>
    %498 = arith.addf %458, %497 : vector<8x128xf32>
    %c91_i32 = arith.constant 91 : i32
    %499 = tpu.dynamic_rotate %36 by %c91_i32 dim 1 : vector<8x128xf32>, i32 -> vector<8x128xf32>
    %500 = arith.cmpf olt, %499, %30 : vector<8x128xf32>
    %501 = arith.extui %500 : vector<8x128xi1> to vector<8x128xi32>
    %502 = arith.sitofp %501 : vector<8x128xi32> to vector<8x128xf32>
    %503 = arith.addf %463, %502 : vector<8x128xf32>
    %c92_i32 = arith.constant 92 : i32
    %504 = tpu.dynamic_rotate %36 by %c92_i32 dim 1 : vector<8x128xf32>, i32 -> vector<8x128xf32>
    %505 = arith.cmpf olt, %504, %30 : vector<8x128xf32>
    %506 = arith.extui %505 : vector<8x128xi1> to vector<8x128xi32>
    %507 = arith.sitofp %506 : vector<8x128xi32> to vector<8x128xf32>
    %508 = arith.addf %468, %507 : vector<8x128xf32>
    %c93_i32 = arith.constant 93 : i32
    %509 = tpu.dynamic_rotate %36 by %c93_i32 dim 1 : vector<8x128xf32>, i32 -> vector<8x128xf32>
    %510 = arith.cmpf olt, %509, %30 : vector<8x128xf32>
    %511 = arith.extui %510 : vector<8x128xi1> to vector<8x128xi32>
    %512 = arith.sitofp %511 : vector<8x128xi32> to vector<8x128xf32>
    %513 = arith.addf %473, %512 : vector<8x128xf32>
    %c94_i32 = arith.constant 94 : i32
    %514 = tpu.dynamic_rotate %36 by %c94_i32 dim 1 : vector<8x128xf32>, i32 -> vector<8x128xf32>
    %515 = arith.cmpf olt, %514, %30 : vector<8x128xf32>
    %516 = arith.extui %515 : vector<8x128xi1> to vector<8x128xi32>
    %517 = arith.sitofp %516 : vector<8x128xi32> to vector<8x128xf32>
    %518 = arith.addf %478, %517 : vector<8x128xf32>
    %c95_i32 = arith.constant 95 : i32
    %519 = tpu.dynamic_rotate %36 by %c95_i32 dim 1 : vector<8x128xf32>, i32 -> vector<8x128xf32>
    %520 = arith.cmpf olt, %519, %30 : vector<8x128xf32>
    %521 = arith.extui %520 : vector<8x128xi1> to vector<8x128xi32>
    %522 = arith.sitofp %521 : vector<8x128xi32> to vector<8x128xf32>
    %523 = arith.addf %483, %522 : vector<8x128xf32>
    %c96_i32 = arith.constant 96 : i32
    %524 = tpu.dynamic_rotate %36 by %c96_i32 dim 1 : vector<8x128xf32>, i32 -> vector<8x128xf32>
    %525 = arith.cmpf olt, %524, %30 : vector<8x128xf32>
    %526 = arith.extui %525 : vector<8x128xi1> to vector<8x128xi32>
    %527 = arith.sitofp %526 : vector<8x128xi32> to vector<8x128xf32>
    %528 = arith.addf %488, %527 : vector<8x128xf32>
    %c97_i32 = arith.constant 97 : i32
    %529 = tpu.dynamic_rotate %36 by %c97_i32 dim 1 : vector<8x128xf32>, i32 -> vector<8x128xf32>
    %530 = arith.cmpf olt, %529, %30 : vector<8x128xf32>
    %531 = arith.extui %530 : vector<8x128xi1> to vector<8x128xi32>
    %532 = arith.sitofp %531 : vector<8x128xi32> to vector<8x128xf32>
    %533 = arith.addf %493, %532 : vector<8x128xf32>
    %c98_i32 = arith.constant 98 : i32
    %534 = tpu.dynamic_rotate %36 by %c98_i32 dim 1 : vector<8x128xf32>, i32 -> vector<8x128xf32>
    %535 = arith.cmpf olt, %534, %30 : vector<8x128xf32>
    %536 = arith.extui %535 : vector<8x128xi1> to vector<8x128xi32>
    %537 = arith.sitofp %536 : vector<8x128xi32> to vector<8x128xf32>
    %538 = arith.addf %498, %537 : vector<8x128xf32>
    %c99_i32 = arith.constant 99 : i32
    %539 = tpu.dynamic_rotate %36 by %c99_i32 dim 1 : vector<8x128xf32>, i32 -> vector<8x128xf32>
    %540 = arith.cmpf olt, %539, %30 : vector<8x128xf32>
    %541 = arith.extui %540 : vector<8x128xi1> to vector<8x128xi32>
    %542 = arith.sitofp %541 : vector<8x128xi32> to vector<8x128xf32>
    %543 = arith.addf %503, %542 : vector<8x128xf32>
    %c100_i32 = arith.constant 100 : i32
    %544 = tpu.dynamic_rotate %36 by %c100_i32 dim 1 : vector<8x128xf32>, i32 -> vector<8x128xf32>
    %545 = arith.cmpf olt, %544, %30 : vector<8x128xf32>
    %546 = arith.extui %545 : vector<8x128xi1> to vector<8x128xi32>
    %547 = arith.sitofp %546 : vector<8x128xi32> to vector<8x128xf32>
    %548 = arith.addf %508, %547 : vector<8x128xf32>
    %c101_i32 = arith.constant 101 : i32
    %549 = tpu.dynamic_rotate %36 by %c101_i32 dim 1 : vector<8x128xf32>, i32 -> vector<8x128xf32>
    %550 = arith.cmpf olt, %549, %30 : vector<8x128xf32>
    %551 = arith.extui %550 : vector<8x128xi1> to vector<8x128xi32>
    %552 = arith.sitofp %551 : vector<8x128xi32> to vector<8x128xf32>
    %553 = arith.addf %513, %552 : vector<8x128xf32>
    %c102_i32 = arith.constant 102 : i32
    %554 = tpu.dynamic_rotate %36 by %c102_i32 dim 1 : vector<8x128xf32>, i32 -> vector<8x128xf32>
    %555 = arith.cmpf olt, %554, %30 : vector<8x128xf32>
    %556 = arith.extui %555 : vector<8x128xi1> to vector<8x128xi32>
    %557 = arith.sitofp %556 : vector<8x128xi32> to vector<8x128xf32>
    %558 = arith.addf %518, %557 : vector<8x128xf32>
    %c103_i32 = arith.constant 103 : i32
    %559 = tpu.dynamic_rotate %36 by %c103_i32 dim 1 : vector<8x128xf32>, i32 -> vector<8x128xf32>
    %560 = arith.cmpf olt, %559, %30 : vector<8x128xf32>
    %561 = arith.extui %560 : vector<8x128xi1> to vector<8x128xi32>
    %562 = arith.sitofp %561 : vector<8x128xi32> to vector<8x128xf32>
    %563 = arith.addf %523, %562 : vector<8x128xf32>
    %c104_i32 = arith.constant 104 : i32
    %564 = tpu.dynamic_rotate %36 by %c104_i32 dim 1 : vector<8x128xf32>, i32 -> vector<8x128xf32>
    %565 = arith.cmpf olt, %564, %30 : vector<8x128xf32>
    %566 = arith.extui %565 : vector<8x128xi1> to vector<8x128xi32>
    %567 = arith.sitofp %566 : vector<8x128xi32> to vector<8x128xf32>
    %568 = arith.addf %528, %567 : vector<8x128xf32>
    %c105_i32 = arith.constant 105 : i32
    %569 = tpu.dynamic_rotate %36 by %c105_i32 dim 1 : vector<8x128xf32>, i32 -> vector<8x128xf32>
    %570 = arith.cmpf olt, %569, %30 : vector<8x128xf32>
    %571 = arith.extui %570 : vector<8x128xi1> to vector<8x128xi32>
    %572 = arith.sitofp %571 : vector<8x128xi32> to vector<8x128xf32>
    %573 = arith.addf %533, %572 : vector<8x128xf32>
    %c106_i32 = arith.constant 106 : i32
    %574 = tpu.dynamic_rotate %36 by %c106_i32 dim 1 : vector<8x128xf32>, i32 -> vector<8x128xf32>
    %575 = arith.cmpf olt, %574, %30 : vector<8x128xf32>
    %576 = arith.extui %575 : vector<8x128xi1> to vector<8x128xi32>
    %577 = arith.sitofp %576 : vector<8x128xi32> to vector<8x128xf32>
    %578 = arith.addf %538, %577 : vector<8x128xf32>
    %c107_i32 = arith.constant 107 : i32
    %579 = tpu.dynamic_rotate %36 by %c107_i32 dim 1 : vector<8x128xf32>, i32 -> vector<8x128xf32>
    %580 = arith.cmpf olt, %579, %30 : vector<8x128xf32>
    %581 = arith.extui %580 : vector<8x128xi1> to vector<8x128xi32>
    %582 = arith.sitofp %581 : vector<8x128xi32> to vector<8x128xf32>
    %583 = arith.addf %543, %582 : vector<8x128xf32>
    %c108_i32 = arith.constant 108 : i32
    %584 = tpu.dynamic_rotate %36 by %c108_i32 dim 1 : vector<8x128xf32>, i32 -> vector<8x128xf32>
    %585 = arith.cmpf olt, %584, %30 : vector<8x128xf32>
    %586 = arith.extui %585 : vector<8x128xi1> to vector<8x128xi32>
    %587 = arith.sitofp %586 : vector<8x128xi32> to vector<8x128xf32>
    %588 = arith.addf %548, %587 : vector<8x128xf32>
    %c109_i32 = arith.constant 109 : i32
    %589 = tpu.dynamic_rotate %36 by %c109_i32 dim 1 : vector<8x128xf32>, i32 -> vector<8x128xf32>
    %590 = arith.cmpf olt, %589, %30 : vector<8x128xf32>
    %591 = arith.extui %590 : vector<8x128xi1> to vector<8x128xi32>
    %592 = arith.sitofp %591 : vector<8x128xi32> to vector<8x128xf32>
    %593 = arith.addf %553, %592 : vector<8x128xf32>
    %c110_i32 = arith.constant 110 : i32
    %594 = tpu.dynamic_rotate %36 by %c110_i32 dim 1 : vector<8x128xf32>, i32 -> vector<8x128xf32>
    %595 = arith.cmpf olt, %594, %30 : vector<8x128xf32>
    %596 = arith.extui %595 : vector<8x128xi1> to vector<8x128xi32>
    %597 = arith.sitofp %596 : vector<8x128xi32> to vector<8x128xf32>
    %598 = arith.addf %558, %597 : vector<8x128xf32>
    %c111_i32 = arith.constant 111 : i32
    %599 = tpu.dynamic_rotate %36 by %c111_i32 dim 1 : vector<8x128xf32>, i32 -> vector<8x128xf32>
    %600 = arith.cmpf olt, %599, %30 : vector<8x128xf32>
    %601 = arith.extui %600 : vector<8x128xi1> to vector<8x128xi32>
    %602 = arith.sitofp %601 : vector<8x128xi32> to vector<8x128xf32>
    %603 = arith.addf %563, %602 : vector<8x128xf32>
    %c112_i32 = arith.constant 112 : i32
    %604 = tpu.dynamic_rotate %36 by %c112_i32 dim 1 : vector<8x128xf32>, i32 -> vector<8x128xf32>
    %605 = arith.cmpf olt, %604, %30 : vector<8x128xf32>
    %606 = arith.extui %605 : vector<8x128xi1> to vector<8x128xi32>
    %607 = arith.sitofp %606 : vector<8x128xi32> to vector<8x128xf32>
    %608 = arith.addf %568, %607 : vector<8x128xf32>
    %c113_i32 = arith.constant 113 : i32
    %609 = tpu.dynamic_rotate %36 by %c113_i32 dim 1 : vector<8x128xf32>, i32 -> vector<8x128xf32>
    %610 = arith.cmpf olt, %609, %30 : vector<8x128xf32>
    %611 = arith.extui %610 : vector<8x128xi1> to vector<8x128xi32>
    %612 = arith.sitofp %611 : vector<8x128xi32> to vector<8x128xf32>
    %613 = arith.addf %573, %612 : vector<8x128xf32>
    %c114_i32 = arith.constant 114 : i32
    %614 = tpu.dynamic_rotate %36 by %c114_i32 dim 1 : vector<8x128xf32>, i32 -> vector<8x128xf32>
    %615 = arith.cmpf olt, %614, %30 : vector<8x128xf32>
    %616 = arith.extui %615 : vector<8x128xi1> to vector<8x128xi32>
    %617 = arith.sitofp %616 : vector<8x128xi32> to vector<8x128xf32>
    %618 = arith.addf %578, %617 : vector<8x128xf32>
    %c115_i32 = arith.constant 115 : i32
    %619 = tpu.dynamic_rotate %36 by %c115_i32 dim 1 : vector<8x128xf32>, i32 -> vector<8x128xf32>
    %620 = arith.cmpf olt, %619, %30 : vector<8x128xf32>
    %621 = arith.extui %620 : vector<8x128xi1> to vector<8x128xi32>
    %622 = arith.sitofp %621 : vector<8x128xi32> to vector<8x128xf32>
    %623 = arith.addf %583, %622 : vector<8x128xf32>
    %c116_i32 = arith.constant 116 : i32
    %624 = tpu.dynamic_rotate %36 by %c116_i32 dim 1 : vector<8x128xf32>, i32 -> vector<8x128xf32>
    %625 = arith.cmpf olt, %624, %30 : vector<8x128xf32>
    %626 = arith.extui %625 : vector<8x128xi1> to vector<8x128xi32>
    %627 = arith.sitofp %626 : vector<8x128xi32> to vector<8x128xf32>
    %628 = arith.addf %588, %627 : vector<8x128xf32>
    %c117_i32 = arith.constant 117 : i32
    %629 = tpu.dynamic_rotate %36 by %c117_i32 dim 1 : vector<8x128xf32>, i32 -> vector<8x128xf32>
    %630 = arith.cmpf olt, %629, %30 : vector<8x128xf32>
    %631 = arith.extui %630 : vector<8x128xi1> to vector<8x128xi32>
    %632 = arith.sitofp %631 : vector<8x128xi32> to vector<8x128xf32>
    %633 = arith.addf %593, %632 : vector<8x128xf32>
    %c118_i32 = arith.constant 118 : i32
    %634 = tpu.dynamic_rotate %36 by %c118_i32 dim 1 : vector<8x128xf32>, i32 -> vector<8x128xf32>
    %635 = arith.cmpf olt, %634, %30 : vector<8x128xf32>
    %636 = arith.extui %635 : vector<8x128xi1> to vector<8x128xi32>
    %637 = arith.sitofp %636 : vector<8x128xi32> to vector<8x128xf32>
    %638 = arith.addf %598, %637 : vector<8x128xf32>
    %c119_i32 = arith.constant 119 : i32
    %639 = tpu.dynamic_rotate %36 by %c119_i32 dim 1 : vector<8x128xf32>, i32 -> vector<8x128xf32>
    %640 = arith.cmpf olt, %639, %30 : vector<8x128xf32>
    %641 = arith.extui %640 : vector<8x128xi1> to vector<8x128xi32>
    %642 = arith.sitofp %641 : vector<8x128xi32> to vector<8x128xf32>
    %643 = arith.addf %603, %642 : vector<8x128xf32>
    %c120_i32 = arith.constant 120 : i32
    %644 = tpu.dynamic_rotate %36 by %c120_i32 dim 1 : vector<8x128xf32>, i32 -> vector<8x128xf32>
    %645 = arith.cmpf olt, %644, %30 : vector<8x128xf32>
    %646 = arith.extui %645 : vector<8x128xi1> to vector<8x128xi32>
    %647 = arith.sitofp %646 : vector<8x128xi32> to vector<8x128xf32>
    %648 = arith.addf %608, %647 : vector<8x128xf32>
    %c121_i32 = arith.constant 121 : i32
    %649 = tpu.dynamic_rotate %36 by %c121_i32 dim 1 : vector<8x128xf32>, i32 -> vector<8x128xf32>
    %650 = arith.cmpf olt, %649, %30 : vector<8x128xf32>
    %651 = arith.extui %650 : vector<8x128xi1> to vector<8x128xi32>
    %652 = arith.sitofp %651 : vector<8x128xi32> to vector<8x128xf32>
    %653 = arith.addf %613, %652 : vector<8x128xf32>
    %c122_i32 = arith.constant 122 : i32
    %654 = tpu.dynamic_rotate %36 by %c122_i32 dim 1 : vector<8x128xf32>, i32 -> vector<8x128xf32>
    %655 = arith.cmpf olt, %654, %30 : vector<8x128xf32>
    %656 = arith.extui %655 : vector<8x128xi1> to vector<8x128xi32>
    %657 = arith.sitofp %656 : vector<8x128xi32> to vector<8x128xf32>
    %658 = arith.addf %618, %657 : vector<8x128xf32>
    %c123_i32 = arith.constant 123 : i32
    %659 = tpu.dynamic_rotate %36 by %c123_i32 dim 1 : vector<8x128xf32>, i32 -> vector<8x128xf32>
    %660 = arith.cmpf olt, %659, %30 : vector<8x128xf32>
    %661 = arith.extui %660 : vector<8x128xi1> to vector<8x128xi32>
    %662 = arith.sitofp %661 : vector<8x128xi32> to vector<8x128xf32>
    %663 = arith.addf %623, %662 : vector<8x128xf32>
    %c124_i32 = arith.constant 124 : i32
    %664 = tpu.dynamic_rotate %36 by %c124_i32 dim 1 : vector<8x128xf32>, i32 -> vector<8x128xf32>
    %665 = arith.cmpf olt, %664, %30 : vector<8x128xf32>
    %666 = arith.extui %665 : vector<8x128xi1> to vector<8x128xi32>
    %667 = arith.sitofp %666 : vector<8x128xi32> to vector<8x128xf32>
    %668 = arith.addf %628, %667 : vector<8x128xf32>
    %c125_i32 = arith.constant 125 : i32
    %669 = tpu.dynamic_rotate %36 by %c125_i32 dim 1 : vector<8x128xf32>, i32 -> vector<8x128xf32>
    %670 = arith.cmpf olt, %669, %30 : vector<8x128xf32>
    %671 = arith.extui %670 : vector<8x128xi1> to vector<8x128xi32>
    %672 = arith.sitofp %671 : vector<8x128xi32> to vector<8x128xf32>
    %673 = arith.addf %633, %672 : vector<8x128xf32>
    %c126_i32 = arith.constant 126 : i32
    %674 = tpu.dynamic_rotate %36 by %c126_i32 dim 1 : vector<8x128xf32>, i32 -> vector<8x128xf32>
    %675 = arith.cmpf olt, %674, %30 : vector<8x128xf32>
    %676 = arith.extui %675 : vector<8x128xi1> to vector<8x128xi32>
    %677 = arith.sitofp %676 : vector<8x128xi32> to vector<8x128xf32>
    %678 = arith.addf %638, %677 : vector<8x128xf32>
    %c127_i32 = arith.constant 127 : i32
    %679 = tpu.dynamic_rotate %36 by %c127_i32 dim 1 : vector<8x128xf32>, i32 -> vector<8x128xf32>
    %680 = arith.cmpf olt, %679, %30 : vector<8x128xf32>
    %681 = arith.extui %680 : vector<8x128xi1> to vector<8x128xi32>
    %682 = arith.sitofp %681 : vector<8x128xi32> to vector<8x128xf32>
    %683 = arith.addf %643, %682 : vector<8x128xf32>
    %684 = arith.addf %648, %653 : vector<8x128xf32>
    %685 = arith.addf %684, %658 : vector<8x128xf32>
    %686 = arith.addf %685, %663 : vector<8x128xf32>
    %687 = arith.addf %686, %668 : vector<8x128xf32>
    %688 = arith.addf %687, %673 : vector<8x128xf32>
    %689 = arith.addf %688, %678 : vector<8x128xf32>
    %690 = arith.addf %689, %683 : vector<8x128xf32>
    %691 = arith.addf %31, %690 : vector<8x128xf32>
    %c1_i32_24 = arith.constant 1 : i32
    %cst_25 = arith.constant 1.000000e+29 : f32
    %692 = vector.broadcast %cst_25 : f32 to vector<8x128xf32>
    %693 = arith.cmpf olt, %30, %692 : vector<8x128xf32>
    %694 = vector.broadcast %21 : vector<8x1xf32> to vector<8x128xf32>
    %695 = arith.cmpf ole, %691, %694 : vector<8x128xf32>
    %696 = arith.andi %693, %695 : vector<8x128xi1>
    %cst_26 = arith.constant -1.000000e+30 : f32
    %697 = vector.broadcast %cst_26 : f32 to vector<8x128xf32>
    %698 = arith.select %696, %30, %697 : vector<8x128xi1>, vector<8x128xf32>
    %699 = vector.broadcast %24 : vector<8x1xf32> to vector<8x128xf32>
    %700 = arith.cmpf ole, %691, %699 : vector<8x128xf32>
    %701 = arith.andi %693, %700 : vector<8x128xi1>
    %cst_27 = arith.constant -1.000000e+30 : f32
    %702 = vector.broadcast %cst_27 : f32 to vector<8x128xf32>
    %703 = arith.select %701, %30, %702 : vector<8x128xi1>, vector<8x128xf32>
    %cst_28 = arith.constant dense<0xFF800000> : vector<8xf32>
    %704 = vector.multi_reduction <maximumf>, %698, %cst_28 [1] : vector<8x128xf32> to vector<8xf32>
    %705 = vector.shape_cast %704 : vector<8xf32> to vector<8x1xf32>
    %706 = arith.maximumf %25, %705 : vector<8x1xf32>
    %cst_29 = arith.constant dense<0xFF800000> : vector<8xf32>
    %707 = vector.multi_reduction <maximumf>, %703, %cst_29 [1] : vector<8x128xf32> to vector<8xf32>
    %708 = vector.shape_cast %707 : vector<8xf32> to vector<8x1xf32>
    %709 = arith.maximumf %25, %708 : vector<8x1xf32>
    %c1_i32_30 = arith.constant 1 : i32
    %710 = arith.addf %706, %709 : vector<8x1xf32>
    %cst_31 = arith.constant 5.000000e-01 : f32
    %711 = vector.broadcast %cst_31 : f32 to vector<8x1xf32>
    %712 = arith.mulf %711, %710 : vector<8x1xf32>
    %cst_32 = arith.constant 0.000000e+00 : f32
    %713 = vector.broadcast %cst_32 : f32 to vector<8x1xf32>
    %714 = arith.cmpf ogt, %16, %713 : vector<8x1xf32>
    %cst_33 = arith.constant 0.000000e+00 : f32
    %715 = vector.broadcast %cst_33 : f32 to vector<8x1xf32>
    %716 = arith.select %714, %712, %715 : vector<8x1xi1>, vector<8x1xf32>
    %717 = vector.shape_cast %716 : vector<8x1xf32> to vector<8x1xf32>
    %718 = vector.broadcast %717 : vector<8x1xf32> to vector<8x128xf32>
    %719 = arith.index_cast %3 : i32 to index
    %c0 = arith.constant 0 : index
    %720 = vector.load %arg2[%719, %c0] : memref<8x128xf32, #tpu.memory_space<vmem>>, vector<8x128xf32>
    tpu.vector_store %arg2[%719, %c0], %718 {strides = array<i32>} : memref<8x128xf32, #tpu.memory_space<vmem>>, vector<8x128xf32>,
    %721 = vector.shape_cast %16 : vector<8x1xf32> to vector<8x1xf32>
    %722 = vector.broadcast %721 : vector<8x1xf32> to vector<8x128xf32>
    %723 = arith.index_cast %3 : i32 to index
    %c0_34 = arith.constant 0 : index
    %724 = vector.load %arg3[%723, %c0_34] : memref<8x128xf32, #tpu.memory_space<vmem>>, vector<8x128xf32>
    tpu.vector_store %arg3[%723, %c0_34], %722 {strides = array<i32>} : memref<8x128xf32, #tpu.memory_space<vmem>>, vector<8x128xf32>,
    %c1_i32_35 = arith.constant 1 : i32
    return
  }
  func.func @transform_0(%arg0: i32) -> (i32, i32) {
    %c0_i32 = arith.constant 0 : i32
    %c0_i32_0 = arith.constant 0 : i32
    return %arg0, %c0_i32 : i32, i32
  }
  func.func @transform_1(%arg0: i32) -> (i32, i32) {
    %c0_i32 = arith.constant 0 : i32
    %c0_i32_0 = arith.constant 0 : i32
    return %arg0, %c0_i32 : i32, i32
  }
  func.func @transform_2(%arg0: i32) -> (i32, i32) {
    %c0_i32 = arith.constant 0 : i32
    %c0_i32_0 = arith.constant 0 : i32
    return %arg0, %c0_i32 : i32, i32
  }
}

</mosaic_0001>

<llo_original>
// kernel: tpu_custom_call.1
$region0: #{tpu_custom_call.1}
  #allocation0 [shape = 'u32[]', space=smem, size = 0x4, offset = 0x4, fixed_abs, tag = 'smem constant byte address 0x4 - core index']
  #allocation1 [shape = 'u32[72,128]{1,0:T(1,128)}', space=vmem, size = 0x9000, scoped, tag = 'internal scratch']
  %s0 = inlined_call_operand.hbm [shape: f32[8,128], index: 0, kind: input, shape index: {}]
  %s1 = inlined_call_operand.hbm [shape: f32[8,128], index: 1, kind: output, shape index: {0}]
  %s2 = inlined_call_operand.hbm [shape: f32[8,128], index: 2, kind: output, shape index: {1}]
  %3 = xla_tuple %s1, %s2
  %s4 = sld [smem:[#allocation0]]
  $region26: #{tpu_custom_call.1} parent=0
    _
  %s6 = ssub.s32 1, %s4
  %s7 = scalar_select 0, %s6, %s4
  $region1: #{tpu_custom_call.1} parent=0
    #allocation2 [shape = 'u8[4096]{0}', space=vmem, size = 0x1000, scoped, tag = 'input window, operand 0, single buffered']
    #allocation3 [shape = 's32[1]{0}', space=sflag, size = 0x4, scoped, tag = 'scoped memory for tpu_custom_call.1']
    #allocation4 [shape = 's32[1]{0}', space=sflag, size = 0x4, scoped, tag = 'scoped memory for tpu_custom_call.1']
    #allocation5 [shape = 'u8[4096]{0}', space=vmem, size = 0x1000, scoped, tag = 'output window, operand 0, single buffered']
    #allocation6 [shape = 'u8[4096]{0}', space=vmem, size = 0x1000, scoped, tag = 'output window, operand 1, single buffered']
    #allocation7 [shape = 's32[1]{0}', space=sflag, size = 0x4, scoped, tag = 'scoped memory for tpu_custom_call.1']
    %8 = vsyncpa [#allocation3], 0
    %9 = vsyncpa [#allocation4], 0
    %10 = vsyncpa [#allocation7], 0
    // Predicated region
    $region2: #{tpu_custom_call.1} parent=1 // pred_check
      _
    $region3: #{tpu_custom_call.1} parent=1 // pred_check_branch
      %12 = sbr.rel (0) target = $region5
    $region4: #{tpu_custom_call.1} parent=1 // pred_region
      %14 = vsyncadd [#allocation3], 0
      %s16 = sshll.u32 %s0, 4
      %s17 = int_to_ptr.hbm [resolvable:$true] %s16
      %s18 = sshll.u32 [#allocation2], 4
      %s19 = int_to_ptr.vmem [resolvable:$true] %s18
      %21 = dma.hbm_to_vmem [thread:$0]  %s17, 128, %s19, [#allocation3]
    $region5: #{tpu_custom_call.1} parent=1 // pred_fallthru
      _
    // Predicated region
    $region6: #{tpu_custom_call.1} parent=1 // pred_check
      _
    $region7: #{tpu_custom_call.1} parent=1 // pred_check_branch
      %23 = sbr.rel (0) target = $region9
    $region8: #{tpu_custom_call.1} parent=1 // pred_region
      %25 = dma.done [#allocation3], 128
    $region9: #{tpu_custom_call.1} parent=1 // pred_fallthru
      _
    %s26 = sadd.s32 0, 0
    %s27 = scalar_lea.vmem [#allocation2], %s26
    %v28 = vld [vmem:[%s27] sm:$0xff]
    %vm29 = vcmp.lt.f32.partialorder %v28, 1e+29
    %v30 = vsel %vm29, 1, 0
    %v31 = vcvt.s32.f32 %v30
    %32 = vadd.xlane.f32.xlu0 %v31
    %v33 = vpop.xlane.xlu0 %32
    %v34 = vadd.f32 %v33, 0.0
    %v35 = vsub.f32 %v34, 1.0
    %v36 = vmul.f32 %v35, 0.5
    %v37 = vfloor.f32 %v36
    %v38 = vmul.f32 %v34, 0.5
    %v39 = vfloor.f32 %v38
    %vm40 = vcmp.lt.f32.partialorder %v28, %v28
    %v41 = vsel %vm40, 1, 0
    %v42 = vcvt.s32.f32 %v41
    %v43 = vadd.f32 %v42, 0.0
    %44 = vrot.lane.b32.xlu0 %v28, 1
    %v45 = vpop.permute.xlu0 %44
    %vm46 = vcmp.lt.f32.partialorder %v45, %v28
    %v47 = vsel %vm46, 1, 0
    %v48 = vcvt.s32.f32 %v47
    %v49 = vadd.f32 %v48, 0.0
    %50 = vrot.lane.b32.xlu0 %v28, 2
    %v51 = vpop.permute.xlu0 %50
    %vm52 = vcmp.lt.f32.partialorder %v51, %v28
    %v53 = vsel %vm52, 1, 0
    %v54 = vcvt.s32.f32 %v53
    %v55 = vadd.f32 %v54, 0.0
    %56 = vrot.lane.b32.xlu0 %v28, 3
    %v57 = vpop.permute.xlu0 %56
    %vm58 = vcmp.lt.f32.partialorder %v57, %v28
    %v59 = vsel %vm58, 1, 0
    %v60 = vcvt.s32.f32 %v59
    %v61 = vadd.f32 %v60, 0.0
    %62 = vrot.lane.b32.xlu0 %v28, 4
    %v63 = vpop.permute.xlu0 %62
    %vm64 = vcmp.lt.f32.partialorder %v63, %v28
    %v65 = vsel %vm64, 1, 0
    %v66 = vcvt.s32.f32 %v65
    %v67 = vadd.f32 %v66, 0.0
    %68 = vrot.lane.b32.xlu0 %v28, 5
    %v69 = vpop.permute.xlu0 %68
    %vm70 = vcmp.lt.f32.partialorder %v69, %v28
    %v71 = vsel %vm70, 1, 0
    %v72 = vcvt.s32.f32 %v71
    %v73 = vadd.f32 %v72, 0.0
    %74 = vrot.lane.b32.xlu0 %v28, 6
    %v75 = vpop.permute.xlu0 %74
    %vm76 = vcmp.lt.f32.partialorder %v75, %v28
    %v77 = vsel %vm76, 1, 0
    %v78 = vcvt.s32.f32 %v77
    %v79 = vadd.f32 %v78, 0.0
    %80 = vrot.lane.b32.xlu0 %v28, 7
    %v81 = vpop.permute.xlu0 %80
    %vm82 = vcmp.lt.f32.partialorder %v81, %v28
    %v83 = vsel %vm82, 1, 0
    %v84 = vcvt.s32.f32 %v83
    %v85 = vadd.f32 %v84, 0.0
    %86 = vrot.lane.b32.xlu0 %v28, 8
    %v87 = vpop.permute.xlu0 %86
    %vm88 = vcmp.lt.f32.partialorder %v87, %v28
    %v89 = vsel %vm88, 1, 0
    %v90 = vcvt.s32.f32 %v89
    %v91 = vadd.f32 %v43, %v90
    %92 = vrot.lane.b32.xlu0 %v28, 9
    %v93 = vpop.permute.xlu0 %92
    %vm94 = vcmp.lt.f32.partialorder %v93, %v28
    %v95 = vsel %vm94, 1, 0
    %v96 = vcvt.s32.f32 %v95
    %v97 = vadd.f32 %v49, %v96
    %98 = vrot.lane.b32.xlu0 %v28, 10
    %v99 = vpop.permute.xlu0 %98
    %vm100 = vcmp.lt.f32.partialorder %v99, %v28
    %v101 = vsel %vm100, 1, 0
    %v102 = vcvt.s32.f32 %v101
    %v103 = vadd.f32 %v55, %v102
    %104 = vrot.lane.b32.xlu0 %v28, 11
    %v105 = vpop.permute.xlu0 %104
    %vm106 = vcmp.lt.f32.partialorder %v105, %v28
    %v107 = vsel %vm106, 1, 0
    %v108 = vcvt.s32.f32 %v107
    %v109 = vadd.f32 %v61, %v108
    %110 = vrot.lane.b32.xlu0 %v28, 12
    %v111 = vpop.permute.xlu0 %110
    %vm112 = vcmp.lt.f32.partialorder %v111, %v28
    %v113 = vsel %vm112, 1, 0
    %v114 = vcvt.s32.f32 %v113
    %v115 = vadd.f32 %v67, %v114
    %116 = vrot.lane.b32.xlu0 %v28, 13
    %v117 = vpop.permute.xlu0 %116
    %vm118 = vcmp.lt.f32.partialorder %v117, %v28
    %v119 = vsel %vm118, 1, 0
    %v120 = vcvt.s32.f32 %v119
    %v121 = vadd.f32 %v73, %v120
    %122 = vrot.lane.b32.xlu0 %v28, 14
    %v123 = vpop.permute.xlu0 %122
    %vm124 = vcmp.lt.f32.partialorder %v123, %v28
    %v125 = vsel %vm124, 1, 0
    %v126 = vcvt.s32.f32 %v125
    %v127 = vadd.f32 %v79, %v126
    %128 = vrot.lane.b32.xlu0 %v28, 15
    %v129 = vpop.permute.xlu0 %128
    %vm130 = vcmp.lt.f32.partialorder %v129, %v28
    %v131 = vsel %vm130, 1, 0
    %v132 = vcvt.s32.f32 %v131
    %v133 = vadd.f32 %v85, %v132
    %134 = vrot.lane.b32.xlu0 %v28, 16
    %v135 = vpop.permute.xlu0 %134
    %vm136 = vcmp.lt.f32.partialorder %v135, %v28
    %v137 = vsel %vm136, 1, 0
    %v138 = vcvt.s32.f32 %v137
    %v139 = vadd.f32 %v91, %v138
    %140 = vrot.lane.b32.xlu0 %v28, 17
    %v141 = vpop.permute.xlu0 %140
    %vm142 = vcmp.lt.f32.partialorder %v141, %v28
    %v143 = vsel %vm142, 1, 0
    %v144 = vcvt.s32.f32 %v143
    %v145 = vadd.f32 %v97, %v144
    %146 = vrot.lane.b32.xlu0 %v28, 18
    %v147 = vpop.permute.xlu0 %146
    %vm148 = vcmp.lt.f32.partialorder %v147, %v28
    %v149 = vsel %vm148, 1, 0
    %v150 = vcvt.s32.f32 %v149
    %v151 = vadd.f32 %v103, %v150
    %152 = vrot.lane.b32.xlu0 %v28, 19
    %v153 = vpop.permute.xlu0 %152
    %vm154 = vcmp.lt.f32.partialorder %v153, %v28
    %v155 = vsel %vm154, 1, 0
    %v156 = vcvt.s32.f32 %v155
    %v157 = vadd.f32 %v109, %v156
    %158 = vrot.lane.b32.xlu0 %v28, 20
    %v159 = vpop.permute.xlu0 %158
    %vm160 = vcmp.lt.f32.partialorder %v159, %v28
    %v161 = vsel %vm160, 1, 0
    %v162 = vcvt.s32.f32 %v161
    %v163 = vadd.f32 %v115, %v162
    %164 = vrot.lane.b32.xlu0 %v28, 21
    %v165 = vpop.permute.xlu0 %164
    %vm166 = vcmp.lt.f32.partialorder %v165, %v28
    %v167 = vsel %vm166, 1, 0
    %v168 = vcvt.s32.f32 %v167
    %v169 = vadd.f32 %v121, %v168
    %170 = vrot.lane.b32.xlu0 %v28, 22
    %v171 = vpop.permute.xlu0 %170
    %vm172 = vcmp.lt.f32.partialorder %v171, %v28
    %v173 = vsel %vm172, 1, 0
    %v174 = vcvt.s32.f32 %v173
    %v175 = vadd.f32 %v127, %v174
    %176 = vrot.lane.b32.xlu0 %v28, 23
    %v177 = vpop.permute.xlu0 %176
    %vm178 = vcmp.lt.f32.partialorder %v177, %v28
    %v179 = vsel %vm178, 1, 0
    %v180 = vcvt.s32.f32 %v179
    %v181 = vadd.f32 %v133, %v180
    %182 = vrot.lane.b32.xlu0 %v28, 24
    %v183 = vpop.permute.xlu0 %182
    %vm184 = vcmp.lt.f32.partialorder %v183, %v28
    %v185 = vsel %vm184, 1, 0
    %v186 = vcvt.s32.f32 %v185
    %v187 = vadd.f32 %v139, %v186
    %188 = vrot.lane.b32.xlu0 %v28, 25
    %v189 = vpop.permute.xlu0 %188
    %vm190 = vcmp.lt.f32.partialorder %v189, %v28
    %v191 = vsel %vm190, 1, 0
    %v192 = vcvt.s32.f32 %v191
    %v193 = vadd.f32 %v145, %v192
    %194 = vrot.lane.b32.xlu0 %v28, 26
    %v195 = vpop.permute.xlu0 %194
    %vm196 = vcmp.lt.f32.partialorder %v195, %v28
    %v197 = vsel %vm196, 1, 0
    %v198 = vcvt.s32.f32 %v197
    %v199 = vadd.f32 %v151, %v198
    %200 = vrot.lane.b32.xlu0 %v28, 27
    %v201 = vpop.permute.xlu0 %200
    %vm202 = vcmp.lt.f32.partialorder %v201, %v28
    %v203 = vsel %vm202, 1, 0
    %v204 = vcvt.s32.f32 %v203
    %v205 = vadd.f32 %v157, %v204
    %206 = vrot.lane.b32.xlu0 %v28, 28
    %v207 = vpop.permute.xlu0 %206
    %vm208 = vcmp.lt.f32.partialorder %v207, %v28
    %v209 = vsel %vm208, 1, 0
    %v210 = vcvt.s32.f32 %v209
    %v211 = vadd.f32 %v163, %v210
    %212 = vrot.lane.b32.xlu0 %v28, 29
    %v213 = vpop.permute.xlu0 %212
    %vm214 = vcmp.lt.f32.partialorder %v213, %v28
    %v215 = vsel %vm214, 1, 0
    %v216 = vcvt.s32.f32 %v215
    %v217 = vadd.f32 %v169, %v216
    %218 = vrot.lane.b32.xlu0 %v28, 30
    %v219 = vpop.permute.xlu0 %218
    %vm220 = vcmp.lt.f32.partialorder %v219, %v28
    %v221 = vsel %vm220, 1, 0
    %v222 = vcvt.s32.f32 %v221
    %v223 = vadd.f32 %v175, %v222
    %224 = vrot.lane.b32.xlu0 %v28, 31
    %v225 = vpop.permute.xlu0 %224
    %vm226 = vcmp.lt.f32.partialorder %v225, %v28
    %v227 = vsel %vm226, 1, 0
    %v228 = vcvt.s32.f32 %v227
    %v229 = vadd.f32 %v181, %v228
    %230 = vrot.lane.b32.xlu0 %v28, 32
    %v231 = vpop.permute.xlu0 %230
    %vm232 = vcmp.lt.f32.partialorder %v231, %v28
    %v233 = vsel %vm232, 1, 0
    %v234 = vcvt.s32.f32 %v233
    %v235 = vadd.f32 %v187, %v234
    %236 = vrot.lane.b32.xlu0 %v28, 33
    %v237 = vpop.permute.xlu0 %236
    %vm238 = vcmp.lt.f32.partialorder %v237, %v28
    %v239 = vsel %vm238, 1, 0
    %v240 = vcvt.s32.f32 %v239
    %v241 = vadd.f32 %v193, %v240
    %242 = vrot.lane.b32.xlu0 %v28, 34
    %v243 = vpop.permute.xlu0 %242
    %vm244 = vcmp.lt.f32.partialorder %v243, %v28
    %v245 = vsel %vm244, 1, 0
    %v246 = vcvt.s32.f32 %v245
    %v247 = vadd.f32 %v199, %v246
    %248 = vrot.lane.b32.xlu0 %v28, 35
    %v249 = vpop.permute.xlu0 %248
    %vm250 = vcmp.lt.f32.partialorder %v249, %v28
    %v251 = vsel %vm250, 1, 0
    %v252 = vcvt.s32.f32 %v251
    %v253 = vadd.f32 %v205, %v252
    %254 = vrot.lane.b32.xlu0 %v28, 36
    %v255 = vpop.permute.xlu0 %254
    %vm256 = vcmp.lt.f32.partialorder %v255, %v28
    %v257 = vsel %vm256, 1, 0
    %v258 = vcvt.s32.f32 %v257
    %v259 = vadd.f32 %v211, %v258
    %260 = vrot.lane.b32.xlu0 %v28, 37
    %v261 = vpop.permute.xlu0 %260
    %vm262 = vcmp.lt.f32.partialorder %v261, %v28
    %v263 = vsel %vm262, 1, 0
    %v264 = vcvt.s32.f32 %v263
    %v265 = vadd.f32 %v217, %v264
    %266 = vrot.lane.b32.xlu0 %v28, 38
    %v267 = vpop.permute.xlu0 %266
    %vm268 = vcmp.lt.f32.partialorder %v267, %v28
    %v269 = vsel %vm268, 1, 0
    %v270 = vcvt.s32.f32 %v269
    %v271 = vadd.f32 %v223, %v270
    %272 = vrot.lane.b32.xlu0 %v28, 39
    %v273 = vpop.permute.xlu0 %272
    %vm274 = vcmp.lt.f32.partialorder %v273, %v28
    %v275 = vsel %vm274, 1, 0
    %v276 = vcvt.s32.f32 %v275
    %v277 = vadd.f32 %v229, %v276
    %278 = vrot.lane.b32.xlu0 %v28, 40
    %v279 = vpop.permute.xlu0 %278
    %vm280 = vcmp.lt.f32.partialorder %v279, %v28
    %v281 = vsel %vm280, 1, 0
    %v282 = vcvt.s32.f32 %v281
    %v283 = vadd.f32 %v235, %v282
    %284 = vrot.lane.b32.xlu0 %v28, 41
    %v285 = vpop.permute.xlu0 %284
    %vm286 = vcmp.lt.f32.partialorder %v285, %v28
    %v287 = vsel %vm286, 1, 0
    %v288 = vcvt.s32.f32 %v287
    %v289 = vadd.f32 %v241, %v288
    %290 = vrot.lane.b32.xlu0 %v28, 42
    %v291 = vpop.permute.xlu0 %290
    %vm292 = vcmp.lt.f32.partialorder %v291, %v28
    %v293 = vsel %vm292, 1, 0
    %v294 = vcvt.s32.f32 %v293
    %v295 = vadd.f32 %v247, %v294
    %296 = vrot.lane.b32.xlu0 %v28, 43
    %v297 = vpop.permute.xlu0 %296
    %vm298 = vcmp.lt.f32.partialorder %v297, %v28
    %v299 = vsel %vm298, 1, 0
    %v300 = vcvt.s32.f32 %v299
    %v301 = vadd.f32 %v253, %v300
    %302 = vrot.lane.b32.xlu0 %v28, 44
    %v303 = vpop.permute.xlu0 %302
    %vm304 = vcmp.lt.f32.partialorder %v303, %v28
    %v305 = vsel %vm304, 1, 0
    %v306 = vcvt.s32.f32 %v305
    %v307 = vadd.f32 %v259, %v306
    %308 = vrot.lane.b32.xlu0 %v28, 45
    %v309 = vpop.permute.xlu0 %308
    %vm310 = vcmp.lt.f32.partialorder %v309, %v28
    %v311 = vsel %vm310, 1, 0
    %v312 = vcvt.s32.f32 %v311
    %v313 = vadd.f32 %v265, %v312
    %314 = vrot.lane.b32.xlu0 %v28, 46
    %v315 = vpop.permute.xlu0 %314
    %vm316 = vcmp.lt.f32.partialorder %v315, %v28
    %v317 = vsel %vm316, 1, 0
    %v318 = vcvt.s32.f32 %v317
    %v319 = vadd.f32 %v271, %v318
    %320 = vrot.lane.b32.xlu0 %v28, 47
    %v321 = vpop.permute.xlu0 %320
    %vm322 = vcmp.lt.f32.partialorder %v321, %v28
    %v323 = vsel %vm322, 1, 0
    %v324 = vcvt.s32.f32 %v323
    %v325 = vadd.f32 %v277, %v324
    %326 = vrot.lane.b32.xlu0 %v28, 48
    %v327 = vpop.permute.xlu0 %326
    %vm328 = vcmp.lt.f32.partialorder %v327, %v28
    %v329 = vsel %vm328, 1, 0
    %v330 = vcvt.s32.f32 %v329
    %v331 = vadd.f32 %v283, %v330
    %332 = vrot.lane.b32.xlu0 %v28, 49
    %v333 = vpop.permute.xlu0 %332
    %vm334 = vcmp.lt.f32.partialorder %v333, %v28
    %v335 = vsel %vm334, 1, 0
    %v336 = vcvt.s32.f32 %v335
    %v337 = vadd.f32 %v289, %v336
    %338 = vrot.lane.b32.xlu0 %v28, 50
    %v339 = vpop.permute.xlu0 %338
    %vm340 = vcmp.lt.f32.partialorder %v339, %v28
    %v341 = vsel %vm340, 1, 0
    %v342 = vcvt.s32.f32 %v341
    %v343 = vadd.f32 %v295, %v342
    %344 = vrot.lane.b32.xlu0 %v28, 51
    %v345 = vpop.permute.xlu0 %344
    %vm346 = vcmp.lt.f32.partialorder %v345, %v28
    %v347 = vsel %vm346, 1, 0
    %v348 = vcvt.s32.f32 %v347
    %v349 = vadd.f32 %v301, %v348
    %350 = vrot.lane.b32.xlu0 %v28, 52
    %v351 = vpop.permute.xlu0 %350
    %vm352 = vcmp.lt.f32.partialorder %v351, %v28
    %v353 = vsel %vm352, 1, 0
    %v354 = vcvt.s32.f32 %v353
    %v355 = vadd.f32 %v307, %v354
    %356 = vrot.lane.b32.xlu0 %v28, 53
    %v357 = vpop.permute.xlu0 %356
    %vm358 = vcmp.lt.f32.partialorder %v357, %v28
    %v359 = vsel %vm358, 1, 0
    %v360 = vcvt.s32.f32 %v359
    %v361 = vadd.f32 %v313, %v360
    %362 = vrot.lane.b32.xlu0 %v28, 54
    %v363 = vpop.permute.xlu0 %362
    %vm364 = vcmp.lt.f32.partialorder %v363, %v28
    %v365 = vsel %vm364, 1, 0
    %v366 = vcvt.s32.f32 %v365
    %v367 = vadd.f32 %v319, %v366
    %368 = vrot.lane.b32.xlu0 %v28, 55
    %v369 = vpop.permute.xlu0 %368
    %vm370 = vcmp.lt.f32.partialorder %v369, %v28
    %v371 = vsel %vm370, 1, 0
    %v372 = vcvt.s32.f32 %v371
    %v373 = vadd.f32 %v325, %v372
    %374 = vrot.lane.b32.xlu0 %v28, 56
    %v375 = vpop.permute.xlu0 %374
    %vm376 = vcmp.lt.f32.partialorder %v375, %v28
    %v377 = vsel %vm376, 1, 0
    %v378 = vcvt.s32.f32 %v377
    %v379 = vadd.f32 %v331, %v378
    %380 = vrot.lane.b32.xlu0 %v28, 57
    %v381 = vpop.permute.xlu0 %380
    %vm382 = vcmp.lt.f32.partialorder %v381, %v28
    %v383 = vsel %vm382, 1, 0
    %v384 = vcvt.s32.f32 %v383
    %v385 = vadd.f32 %v337, %v384
    %386 = vrot.lane.b32.xlu0 %v28, 58
    %v387 = vpop.permute.xlu0 %386
    %vm388 = vcmp.lt.f32.partialorder %v387, %v28
    %v389 = vsel %vm388, 1, 0
    %v390 = vcvt.s32.f32 %v389
    %v391 = vadd.f32 %v343, %v390
    %392 = vrot.lane.b32.xlu0 %v28, 59
    %v393 = vpop.permute.xlu0 %392
    %vm394 = vcmp.lt.f32.partialorder %v393, %v28
    %v395 = vsel %vm394, 1, 0
    %v396 = vcvt.s32.f32 %v395
    %v397 = vadd.f32 %v349, %v396
    %398 = vrot.lane.b32.xlu0 %v28, 60
    %v399 = vpop.permute.xlu0 %398
    %vm400 = vcmp.lt.f32.partialorder %v399, %v28
    %v401 = vsel %vm400, 1, 0
    %v402 = vcvt.s32.f32 %v401
    %v403 = vadd.f32 %v355, %v402
    %404 = vrot.lane.b32.xlu0 %v28, 61
    %v405 = vpop.permute.xlu0 %404
    %vm406 = vcmp.lt.f32.partialorder %v405, %v28
    %v407 = vsel %vm406, 1, 0
    %v408 = vcvt.s32.f32 %v407
    %v409 = vadd.f32 %v361, %v408
    %410 = vrot.lane.b32.xlu0 %v28, 62
    %v411 = vpop.permute.xlu0 %410
    %vm412 = vcmp.lt.f32.partialorder %v411, %v28
    %v413 = vsel %vm412, 1, 0
    %v414 = vcvt.s32.f32 %v413
    %v415 = vadd.f32 %v367, %v414
    %416 = vrot.lane.b32.xlu0 %v28, 63
    %v417 = vpop.permute.xlu0 %416
    %vm418 = vcmp.lt.f32.partialorder %v417, %v28
    %v419 = vsel %vm418, 1, 0
    %v420 = vcvt.s32.f32 %v419
    %v421 = vadd.f32 %v373, %v420
    %422 = vrot.lane.b32.xlu0 %v28, 64
    %v423 = vpop.permute.xlu0 %422
    %vm424 = vcmp.lt.f32.partialorder %v423, %v28
    %v425 = vsel %vm424, 1, 0
    %v426 = vcvt.s32.f32 %v425
    %v427 = vadd.f32 %v379, %v426
    %428 = vrot.lane.b32.xlu0 %v28, 65
    %v429 = vpop.permute.xlu0 %428
    %vm430 = vcmp.lt.f32.partialorder %v429, %v28
    %v431 = vsel %vm430, 1, 0
    %v432 = vcvt.s32.f32 %v431
    %v433 = vadd.f32 %v385, %v432
    %434 = vrot.lane.b32.xlu0 %v28, 66
    %v435 = vpop.permute.xlu0 %434
    %vm436 = vcmp.lt.f32.partialorder %v435, %v28
    %v437 = vsel %vm436, 1, 0
    %v438 = vcvt.s32.f32 %v437
    %v439 = vadd.f32 %v391, %v438
    %440 = vrot.lane.b32.xlu0 %v28, 67
    %v441 = vpop.permute.xlu0 %440
    %vm442 = vcmp.lt.f32.partialorder %v441, %v28
    %v443 = vsel %vm442, 1, 0
    %v444 = vcvt.s32.f32 %v443
    %v445 = vadd.f32 %v397, %v444
    %446 = vrot.lane.b32.xlu0 %v28, 68
    %v447 = vpop.permute.xlu0 %446
    %vm448 = vcmp.lt.f32.partialorder %v447, %v28
    %v449 = vsel %vm448, 1, 0
    %v450 = vcvt.s32.f32 %v449
    %v451 = vadd.f32 %v403, %v450
    %452 = vrot.lane.b32.xlu0 %v28, 69
    %v453 = vpop.permute.xlu0 %452
    %vm454 = vcmp.lt.f32.partialorder %v453, %v28
    %v455 = vsel %vm454, 1, 0
    %v456 = vcvt.s32.f32 %v455
    %v457 = vadd.f32 %v409, %v456
    %458 = vrot.lane.b32.xlu0 %v28, 70
    %v459 = vpop.permute.xlu0 %458
    %vm460 = vcmp.lt.f32.partialorder %v459, %v28
    %v461 = vsel %vm460, 1, 0
    %v462 = vcvt.s32.f32 %v461
    %v463 = vadd.f32 %v415, %v462
    %464 = vrot.lane.b32.xlu0 %v28, 71
    %v465 = vpop.permute.xlu0 %464
    %vm466 = vcmp.lt.f32.partialorder %v465, %v28
    %v467 = vsel %vm466, 1, 0
    %v468 = vcvt.s32.f32 %v467
    %v469 = vadd.f32 %v421, %v468
    %470 = vrot.lane.b32.xlu0 %v28, 72
    %v471 = vpop.permute.xlu0 %470
    %vm472 = vcmp.lt.f32.partialorder %v471, %v28
    %v473 = vsel %vm472, 1, 0
    %v474 = vcvt.s32.f32 %v473
    %v475 = vadd.f32 %v427, %v474
    %476 = vrot.lane.b32.xlu0 %v28, 73
    %v477 = vpop.permute.xlu0 %476
    %vm478 = vcmp.lt.f32.partialorder %v477, %v28
    %v479 = vsel %vm478, 1, 0
    %v480 = vcvt.s32.f32 %v479
    %v481 = vadd.f32 %v433, %v480
    %482 = vrot.lane.b32.xlu0 %v28, 74
    %v483 = vpop.permute.xlu0 %482
    %vm484 = vcmp.lt.f32.partialorder %v483, %v28
    %v485 = vsel %vm484, 1, 0
    %v486 = vcvt.s32.f32 %v485
    %v487 = vadd.f32 %v439, %v486
    %488 = vrot.lane.b32.xlu0 %v28, 75
    %v489 = vpop.permute.xlu0 %488
    %vm490 = vcmp.lt.f32.partialorder %v489, %v28
    %v491 = vsel %vm490, 1, 0
    %v492 = vcvt.s32.f32 %v491
    %v493 = vadd.f32 %v445, %v492
    %494 = vrot.lane.b32.xlu0 %v28, 76
    %v495 = vpop.permute.xlu0 %494
    %vm496 = vcmp.lt.f32.partialorder %v495, %v28
    %v497 = vsel %vm496, 1, 0
    %v498 = vcvt.s32.f32 %v497
    %v499 = vadd.f32 %v451, %v498
    %500 = vrot.lane.b32.xlu0 %v28, 77
    %v501 = vpop.permute.xlu0 %500
    %vm502 = vcmp.lt.f32.partialorder %v501, %v28
    %v503 = vsel %vm502, 1, 0
    %v504 = vcvt.s32.f32 %v503
    %v505 = vadd.f32 %v457, %v504
    %506 = vrot.lane.b32.xlu0 %v28, 78
    %v507 = vpop.permute.xlu0 %506
    %vm508 = vcmp.lt.f32.partialorder %v507, %v28
    %v509 = vsel %vm508, 1, 0
    %v510 = vcvt.s32.f32 %v509
    %v511 = vadd.f32 %v463, %v510
    %512 = vrot.lane.b32.xlu0 %v28, 79
    %v513 = vpop.permute.xlu0 %512
    %vm514 = vcmp.lt.f32.partialorder %v513, %v28
    %v515 = vsel %vm514, 1, 0
    %v516 = vcvt.s32.f32 %v515
    %v517 = vadd.f32 %v469, %v516
    %518 = vrot.lane.b32.xlu0 %v28, 80
    %v519 = vpop.permute.xlu0 %518
    %vm520 = vcmp.lt.f32.partialorder %v519, %v28
    %v521 = vsel %vm520, 1, 0
    %v522 = vcvt.s32.f32 %v521
    %v523 = vadd.f32 %v475, %v522
    %524 = vrot.lane.b32.xlu0 %v28, 81
    %v525 = vpop.permute.xlu0 %524
    %vm526 = vcmp.lt.f32.partialorder %v525, %v28
    %v527 = vsel %vm526, 1, 0
    %v528 = vcvt.s32.f32 %v527
    %v529 = vadd.f32 %v481, %v528
    %530 = vrot.lane.b32.xlu0 %v28, 82
    %v531 = vpop.permute.xlu0 %530
    %vm532 = vcmp.lt.f32.partialorder %v531, %v28
    %v533 = vsel %vm532, 1, 0
    %v534 = vcvt.s32.f32 %v533
    %v535 = vadd.f32 %v487, %v534
    %536 = vrot.lane.b32.xlu0 %v28, 83
    %v537 = vpop.permute.xlu0 %536
    %vm538 = vcmp.lt.f32.partialorder %v537, %v28
    %v539 = vsel %vm538, 1, 0
    %v540 = vcvt.s32.f32 %v539
    %v541 = vadd.f32 %v493, %v540
    %542 = vrot.lane.b32.xlu0 %v28, 84
    %v543 = vpop.permute.xlu0 %542
    %vm544 = vcmp.lt.f32.partialorder %v543, %v28
    %v545 = vsel %vm544, 1, 0
    %v546 = vcvt.s32.f32 %v545
    %v547 = vadd.f32 %v499, %v546
    %548 = vrot.lane.b32.xlu0 %v28, 85
    %v549 = vpop.permute.xlu0 %548
    %vm550 = vcmp.lt.f32.partialorder %v549, %v28
    %v551 = vsel %vm550, 1, 0
    %v552 = vcvt.s32.f32 %v551
    %v553 = vadd.f32 %v505, %v552
    %554 = vrot.lane.b32.xlu0 %v28, 86
    %v555 = vpop.permute.xlu0 %554
    %vm556 = vcmp.lt.f32.partialorder %v555, %v28
    %v557 = vsel %vm556, 1, 0
    %v558 = vcvt.s32.f32 %v557
    %v559 = vadd.f32 %v511, %v558
    %560 = vrot.lane.b32.xlu0 %v28, 87
    %v561 = vpop.permute.xlu0 %560
    %vm562 = vcmp.lt.f32.partialorder %v561, %v28
    %v563 = vsel %vm562, 1, 0
    %v564 = vcvt.s32.f32 %v563
    %v565 = vadd.f32 %v517, %v564
    %566 = vrot.lane.b32.xlu0 %v28, 88
    %v567 = vpop.permute.xlu0 %566
    %vm568 = vcmp.lt.f32.partialorder %v567, %v28
    %v569 = vsel %vm568, 1, 0
    %v570 = vcvt.s32.f32 %v569
    %v571 = vadd.f32 %v523, %v570
    %572 = vrot.lane.b32.xlu0 %v28, 89
    %v573 = vpop.permute.xlu0 %572
    %vm574 = vcmp.lt.f32.partialorder %v573, %v28
    %v575 = vsel %vm574, 1, 0
    %v576 = vcvt.s32.f32 %v575
    %v577 = vadd.f32 %v529, %v576
    %578 = vrot.lane.b32.xlu0 %v28, 90
    %v579 = vpop.permute.xlu0 %578
    %vm580 = vcmp.lt.f32.partialorder %v579, %v28
    %v581 = vsel %vm580, 1, 0
    %v582 = vcvt.s32.f32 %v581
    %v583 = vadd.f32 %v535, %v582
    %584 = vrot.lane.b32.xlu0 %v28, 91
    %v585 = vpop.permute.xlu0 %584
    %vm586 = vcmp.lt.f32.partialorder %v585, %v28
    %v587 = vsel %vm586, 1, 0
    %v588 = vcvt.s32.f32 %v587
    %v589 = vadd.f32 %v541, %v588
    %590 = vrot.lane.b32.xlu0 %v28, 92
    %v591 = vpop.permute.xlu0 %590
    %vm592 = vcmp.lt.f32.partialorder %v591, %v28
    %v593 = vsel %vm592, 1, 0
    %v594 = vcvt.s32.f32 %v593
    %v595 = vadd.f32 %v547, %v594
    %596 = vrot.lane.b32.xlu0 %v28, 93
    %v597 = vpop.permute.xlu0 %596
    %vm598 = vcmp.lt.f32.partialorder %v597, %v28
    %v599 = vsel %vm598, 1, 0
    %v600 = vcvt.s32.f32 %v599
    %v601 = vadd.f32 %v553, %v600
    %602 = vrot.lane.b32.xlu0 %v28, 94
    %v603 = vpop.permute.xlu0 %602
    %vm604 = vcmp.lt.f32.partialorder %v603, %v28
    %v605 = vsel %vm604, 1, 0
    %v606 = vcvt.s32.f32 %v605
    %v607 = vadd.f32 %v559, %v606
    %608 = vrot.lane.b32.xlu0 %v28, 95
    %v609 = vpop.permute.xlu0 %608
    %vm610 = vcmp.lt.f32.partialorder %v609, %v28
    %v611 = vsel %vm610, 1, 0
    %v612 = vcvt.s32.f32 %v611
    %v613 = vadd.f32 %v565, %v612
    %614 = vrot.lane.b32.xlu0 %v28, 96
    %v615 = vpop.permute.xlu0 %614
    %vm616 = vcmp.lt.f32.partialorder %v615, %v28
    %v617 = vsel %vm616, 1, 0
    %v618 = vcvt.s32.f32 %v617
    %v619 = vadd.f32 %v571, %v618
    %620 = vrot.lane.b32.xlu0 %v28, 97
    %v621 = vpop.permute.xlu0 %620
    %vm622 = vcmp.lt.f32.partialorder %v621, %v28
    %v623 = vsel %vm622, 1, 0
    %v624 = vcvt.s32.f32 %v623
    %v625 = vadd.f32 %v577, %v624
    %626 = vrot.lane.b32.xlu0 %v28, 98
    %v627 = vpop.permute.xlu0 %626
    %vm628 = vcmp.lt.f32.partialorder %v627, %v28
    %v629 = vsel %vm628, 1, 0
    %v630 = vcvt.s32.f32 %v629
    %v631 = vadd.f32 %v583, %v630
    %632 = vrot.lane.b32.xlu0 %v28, 99
    %v633 = vpop.permute.xlu0 %632
    %vm634 = vcmp.lt.f32.partialorder %v633, %v28
    %v635 = vsel %vm634, 1, 0
    %v636 = vcvt.s32.f32 %v635
    %v637 = vadd.f32 %v589, %v636
    %638 = vrot.lane.b32.xlu0 %v28, 100
    %v639 = vpop.permute.xlu0 %638
    %vm640 = vcmp.lt.f32.partialorder %v639, %v28
    %v641 = vsel %vm640, 1, 0
    %v642 = vcvt.s32.f32 %v641
    %v643 = vadd.f32 %v595, %v642
    %644 = vrot.lane.b32.xlu0 %v28, 101
    %v645 = vpop.permute.xlu0 %644
    %vm646 = vcmp.lt.f32.partialorder %v645, %v28
    %v647 = vsel %vm646, 1, 0
    %v648 = vcvt.s32.f32 %v647
    %v649 = vadd.f32 %v601, %v648
    %650 = vrot.lane.b32.xlu0 %v28, 102
    %v651 = vpop.permute.xlu0 %650
    %vm652 = vcmp.lt.f32.partialorder %v651, %v28
    %v653 = vsel %vm652, 1, 0
    %v654 = vcvt.s32.f32 %v653
    %v655 = vadd.f32 %v607, %v654
    %656 = vrot.lane.b32.xlu0 %v28, 103
    %v657 = vpop.permute.xlu0 %656
    %vm658 = vcmp.lt.f32.partialorder %v657, %v28
    %v659 = vsel %vm658, 1, 0
    %v660 = vcvt.s32.f32 %v659
    %v661 = vadd.f32 %v613, %v660
    %662 = vrot.lane.b32.xlu0 %v28, 104
    %v663 = vpop.permute.xlu0 %662
    %vm664 = vcmp.lt.f32.partialorder %v663, %v28
    %v665 = vsel %vm664, 1, 0
    %v666 = vcvt.s32.f32 %v665
    %v667 = vadd.f32 %v619, %v666
    %668 = vrot.lane.b32.xlu0 %v28, 105
    %v669 = vpop.permute.xlu0 %668
    %vm670 = vcmp.lt.f32.partialorder %v669, %v28
    %v671 = vsel %vm670, 1, 0
    %v672 = vcvt.s32.f32 %v671
    %v673 = vadd.f32 %v625, %v672
    %674 = vrot.lane.b32.xlu0 %v28, 106
    %v675 = vpop.permute.xlu0 %674
    %vm676 = vcmp.lt.f32.partialorder %v675, %v28
    %v677 = vsel %vm676, 1, 0
    %v678 = vcvt.s32.f32 %v677
    %v679 = vadd.f32 %v631, %v678
    %680 = vrot.lane.b32.xlu0 %v28, 107
    %v681 = vpop.permute.xlu0 %680
    %vm682 = vcmp.lt.f32.partialorder %v681, %v28
    %v683 = vsel %vm682, 1, 0
    %v684 = vcvt.s32.f32 %v683
    %v685 = vadd.f32 %v637, %v684
    %686 = vrot.lane.b32.xlu0 %v28, 108
    %v687 = vpop.permute.xlu0 %686
    %vm688 = vcmp.lt.f32.partialorder %v687, %v28
    %v689 = vsel %vm688, 1, 0
    %v690 = vcvt.s32.f32 %v689
    %v691 = vadd.f32 %v643, %v690
    %692 = vrot.lane.b32.xlu0 %v28, 109
    %v693 = vpop.permute.xlu0 %692
    %vm694 = vcmp.lt.f32.partialorder %v693, %v28
    %v695 = vsel %vm694, 1, 0
    %v696 = vcvt.s32.f32 %v695
    %v697 = vadd.f32 %v649, %v696
    %698 = vrot.lane.b32.xlu0 %v28, 110
    %v699 = vpop.permute.xlu0 %698
    %vm700 = vcmp.lt.f32.partialorder %v699, %v28
    %v701 = vsel %vm700, 1, 0
    %v702 = vcvt.s32.f32 %v701
    %v703 = vadd.f32 %v655, %v702
    %704 = vrot.lane.b32.xlu0 %v28, 111
    %v705 = vpop.permute.xlu0 %704
    %vm706 = vcmp.lt.f32.partialorder %v705, %v28
    %v707 = vsel %vm706, 1, 0
    %v708 = vcvt.s32.f32 %v707
    %v709 = vadd.f32 %v661, %v708
    %710 = vrot.lane.b32.xlu0 %v28, 112
    %v711 = vpop.permute.xlu0 %710
    %vm712 = vcmp.lt.f32.partialorder %v711, %v28
    %v713 = vsel %vm712, 1, 0
    %v714 = vcvt.s32.f32 %v713
    %v715 = vadd.f32 %v667, %v714
    %716 = vrot.lane.b32.xlu0 %v28, 113
    %v717 = vpop.permute.xlu0 %716
    %vm718 = vcmp.lt.f32.partialorder %v717, %v28
    %v719 = vsel %vm718, 1, 0
    %v720 = vcvt.s32.f32 %v719
    %v721 = vadd.f32 %v673, %v720
    %722 = vrot.lane.b32.xlu0 %v28, 114
    %v723 = vpop.permute.xlu0 %722
    %vm724 = vcmp.lt.f32.partialorder %v723, %v28
    %v725 = vsel %vm724, 1, 0
    %v726 = vcvt.s32.f32 %v725
    %v727 = vadd.f32 %v679, %v726
    %728 = vrot.lane.b32.xlu0 %v28, 115
    %v729 = vpop.permute.xlu0 %728
    %vm730 = vcmp.lt.f32.partialorder %v729, %v28
    %v731 = vsel %vm730, 1, 0
    %v732 = vcvt.s32.f32 %v731
    %v733 = vadd.f32 %v685, %v732
    %734 = vrot.lane.b32.xlu0 %v28, 116
    %v735 = vpop.permute.xlu0 %734
    %vm736 = vcmp.lt.f32.partialorder %v735, %v28
    %v737 = vsel %vm736, 1, 0
    %v738 = vcvt.s32.f32 %v737
    %v739 = vadd.f32 %v691, %v738
    %740 = vrot.lane.b32.xlu0 %v28, 117
    %v741 = vpop.permute.xlu0 %740
    %vm742 = vcmp.lt.f32.partialorder %v741, %v28
    %v743 = vsel %vm742, 1, 0
    %v744 = vcvt.s32.f32 %v743
    %v745 = vadd.f32 %v697, %v744
    %746 = vrot.lane.b32.xlu0 %v28, 118
    %v747 = vpop.permute.xlu0 %746
    %vm748 = vcmp.lt.f32.partialorder %v747, %v28
    %v749 = vsel %vm748, 1, 0
    %v750 = vcvt.s32.f32 %v749
    %v751 = vadd.f32 %v703, %v750
    %752 = vrot.lane.b32.xlu0 %v28, 119
    %v753 = vpop.permute.xlu0 %752
    %vm754 = vcmp.lt.f32.partialorder %v753, %v28
    %v755 = vsel %vm754, 1, 0
    %v756 = vcvt.s32.f32 %v755
    %v757 = vadd.f32 %v709, %v756
    %758 = vrot.lane.b32.xlu0 %v28, 120
    %v759 = vpop.permute.xlu0 %758
    %vm760 = vcmp.lt.f32.partialorder %v759, %v28
    %v761 = vsel %vm760, 1, 0
    %v762 = vcvt.s32.f32 %v761
    %v763 = vadd.f32 %v715, %v762
    %764 = vrot.lane.b32.xlu0 %v28, 121
    %v765 = vpop.permute.xlu0 %764
    %vm766 = vcmp.lt.f32.partialorder %v765, %v28
    %v767 = vsel %vm766, 1, 0
    %v768 = vcvt.s32.f32 %v767
    %v769 = vadd.f32 %v721, %v768
    %770 = vrot.lane.b32.xlu0 %v28, 122
    %v771 = vpop.permute.xlu0 %770
    %vm772 = vcmp.lt.f32.partialorder %v771, %v28
    %v773 = vsel %vm772, 1, 0
    %v774 = vcvt.s32.f32 %v773
    %v775 = vadd.f32 %v727, %v774
    %776 = vrot.lane.b32.xlu0 %v28, 123
    %v777 = vpop.permute.xlu0 %776
    %vm778 = vcmp.lt.f32.partialorder %v777, %v28
    %v779 = vsel %vm778, 1, 0
    %v780 = vcvt.s32.f32 %v779
    %v781 = vadd.f32 %v733, %v780
    %782 = vrot.lane.b32.xlu0 %v28, 124
    %v783 = vpop.permute.xlu0 %782
    %vm784 = vcmp.lt.f32.partialorder %v783, %v28
    %v785 = vsel %vm784, 1, 0
    %v786 = vcvt.s32.f32 %v785
    %v787 = vadd.f32 %v739, %v786
    %788 = vrot.lane.b32.xlu0 %v28, 125
    %v789 = vpop.permute.xlu0 %788
    %vm790 = vcmp.lt.f32.partialorder %v789, %v28
    %v791 = vsel %vm790, 1, 0
    %v792 = vcvt.s32.f32 %v791
    %v793 = vadd.f32 %v745, %v792
    %794 = vrot.lane.b32.xlu0 %v28, 126
    %v795 = vpop.permute.xlu0 %794
    %vm796 = vcmp.lt.f32.partialorder %v795, %v28
    %v797 = vsel %vm796, 1, 0
    %v798 = vcvt.s32.f32 %v797
    %v799 = vadd.f32 %v751, %v798
    %800 = vrot.lane.b32.xlu0 %v28, 127
    %v801 = vpop.permute.xlu0 %800
    %vm802 = vcmp.lt.f32.partialorder %v801, %v28
    %v803 = vsel %vm802, 1, 0
    %v804 = vcvt.s32.f32 %v803
    %v805 = vadd.f32 %v757, %v804
    %v806 = vadd.f32 %v763, %v769
    %v807 = vadd.f32 %v806, %v775
    %v808 = vadd.f32 %v807, %v781
    %v809 = vadd.f32 %v808, %v787
    %v810 = vadd.f32 %v809, %v793
    %v811 = vadd.f32 %v810, %v799
    %v812 = vadd.f32 %v811, %v805
    %v813 = vadd.f32 %v812, 0.0
    %vm814 = vcmp.le.f32.partialorder %v813, %v37
    %vm815 = vmand %vm29, %vm814
    %v816 = vsel %vm815, %v28, -1e+30
    %vm817 = vcmp.le.f32.partialorder %v813, %v39
    %vm818 = vmand %vm29, %vm817
    %v819 = vsel %vm818, %v28, -1e+30
    %820 = vmax.xlane.f32.xlu0 %v816
    %v821 = vpop.xlane.xlu0 %820
    %v822 = vmax.f32 %v821, -1e+30
    %823 = vmax.xlane.f32.xlu0 %v819
    %v824 = vpop.xlane.xlu0 %823
    %v825 = vmax.f32 %v824, -1e+30
    %v826 = vadd.f32 %v822, %v825
    %v827 = vmul.f32 %v826, 0.5
    %vm828 = vcmp.gt.f32.partialorder %v34, 0.0
    %v829 = vsel %vm828, %v827, 0.0
    %830 = vst [vmem:[#allocation5] sm:$0xff] %v829
    %831 = vst [vmem:[#allocation6] sm:$0xff] %v34
    // Predicated region
    $region10: #{tpu_custom_call.1} parent=1 // pred_check
      _
    $region11: #{tpu_custom_call.1} parent=1 // pred_check_branch
      %833 = sbr.rel (0) target = $region13
    $region12: #{tpu_custom_call.1} parent=1 // pred_region
      %835 = vsyncadd [#allocation4], 0
      %s837 = sshll.u32 [#allocation5], 4
      %s838 = int_to_ptr.vmem [resolvable:$true] %s837
      %s839 = sshll.u32 %s1, 4
      %s840 = int_to_ptr.hbm [resolvable:$true] %s839
      %842 = dma.vmem_to_hbm [thread:$0]  %s838, 128, %s840, [#allocation4]
    $region13: #{tpu_custom_call.1} parent=1 // pred_fallthru
      _
    // Predicated region
    $region14: #{tpu_custom_call.1} parent=1 // pred_check
      _
    $region15: #{tpu_custom_call.1} parent=1 // pred_check_branch
      %844 = sbr.rel (0) target = $region17
    $region16: #{tpu_custom_call.1} parent=1 // pred_region
      %846 = vsyncadd [#allocation7], 0
      %s848 = sshll.u32 [#allocation6], 4
      %s849 = int_to_ptr.vmem [resolvable:$true] %s848
      %s850 = sshll.u32 %s2, 4
      %s851 = int_to_ptr.hbm [resolvable:$true] %s850
      %853 = dma.vmem_to_hbm [thread:$0]  %s849, 128, %s851, [#allocation7]
    $region17: #{tpu_custom_call.1} parent=1 // pred_fallthru
      _
    // Predicated region
    $region18: #{tpu_custom_call.1} parent=1 // pred_check
      _
    $region19: #{tpu_custom_call.1} parent=1 // pred_check_branch
      %855 = sbr.rel (0) target = $region21
    $region20: #{tpu_custom_call.1} parent=1 // pred_region
      %857 = dma.done [#allocation4], 128
    $region21: #{tpu_custom_call.1} parent=1 // pred_fallthru
      _
    // Predicated region
    $region22: #{tpu_custom_call.1} parent=1 // pred_check
      _
    $region23: #{tpu_custom_call.1} parent=1 // pred_check_branch
      %859 = sbr.rel (0) target = $region25
    $region24: #{tpu_custom_call.1} parent=1 // pred_region
      %861 = dma.done [#allocation7], 128
    $region25: #{tpu_custom_call.1} parent=1 // pred_fallthru
      _
    %862 = vsyncpa [#allocation3], 1
    %863 = vsyncpa [#allocation4], 1
    %864 = vsyncpa [#allocation7], 1

</llo_original>
